<compile_context>
chip_gen: v7x
topology: tpu7x:2x2x1
jax: 0.10.0
libtpu: 0.0.40
codegen_flags: <defaults>
</compile_context>

<pallas_src>
import numpy as np
import jax
import jax.numpy as jnp
from jax import lax
from jax.experimental import pallas as pl
from jax.experimental.pallas import tpu as pltpu

# ---- scaled-down BERT-base-like config ----
BATCH = 2
SEQ = 8
HIDDEN = 32
NUM_HEADS = 2
HEAD_DIM = HIDDEN // NUM_HEADS
INTERMEDIATE = 64
NUM_LAYERS = 2
VOCAB = 100
MAX_POS = 16
LN_EPS = 1e-12

MATMUL_DTYPE = jnp.bfloat16  # MXU operand dtype (accumulation stays f32)

STACKED_NAMES = ["wqkv", "bqkv", "wo", "bo", "g1", "b1",
                 "w1", "bb1", "w2", "bb2", "g2", "b2"]
MATMUL_WEIGHTS = {"wqkv", "wo", "w1", "w2"}


def _layer_norm(x, g, b, eps=LN_EPS):
    mu = jnp.mean(x, axis=-1, keepdims=True)
    var = jnp.mean((x - mu) ** 2, axis=-1, keepdims=True)
    return (x - mu) * jax.lax.rsqrt(var + eps) * g + b


def _mm(x_f32, w_bf16):
    # bf16 MXU matmul with f32 accumulation; each input is cast exactly once.
    return jnp.dot(x_f32.astype(MATMUL_DTYPE), w_bf16,
                   preferred_element_type=jnp.float32)


# ---------------- Fully fused forward kernel ----------------
def fused_encoder_kernel(x_ref, abias_ref, pmat_ref, embg_ref, embb_ref,
                         wqkv_ref, bqkv_ref, wo_ref, bo_ref, g1_ref, b1_ref,
                         w1_ref, bb1_ref, w2_ref, bb2_ref, g2_ref, b2_ref,
                         o_ref):
    H = HIDDEN
    # --- embedding layernorm on the full [B*S, H] slab ---
    x = _layer_norm(x_ref[...], embg_ref[...], embb_ref[...])        # [BS, H] f32

    # Additive key-mask bias, hoisted out of the layer/head loops (JAX does not
    # CSE broadcast_in_dim).  [B, S_q, S_k]
    abias3 = jnp.broadcast_to(abias_ref[...][:, None, :], (BATCH, SEQ, SEQ))

    scale = 1.0 / np.sqrt(HEAD_DIM)

    for l in range(NUM_LAYERS):  # static unroll; all layer weights VMEM resident
        # Fused Q/K/V projection: one [BS, H] @ [H, 3H] MXU push per layer.
        qkv = _mm(x, wqkv_ref[l]) + bqkv_ref[l]                       # [BS, 3H]
        q = qkv[:, 0:H]
        k = qkv[:, H:2 * H]
        v = qkv[:, 2 * H:3 * H]

        # Per-head attention, batch dim folded into one 3-D einsum per dot.
        ctx_heads = []
        for h in range(NUM_HEADS):
            c0 = h * HEAD_DIM
            qh = q[:, c0:c0 + HEAD_DIM].reshape(
                BATCH, SEQ, HEAD_DIM).astype(MATMUL_DTYPE)
            kh = k[:, c0:c0 + HEAD_DIM].reshape(
                BATCH, SEQ, HEAD_DIM).astype(MATMUL_DTYPE)
            vh = v[:, c0:c0 + HEAD_DIM].reshape(
                BATCH, SEQ, HEAD_DIM).astype(MATMUL_DTYPE)
            scores = jnp.einsum('bqd,bkd->bqk', qh, kh,
                                preferred_element_type=jnp.float32) * scale
            scores = scores + abias3                                  # mask padded keys
            scores = scores - jnp.max(scores, axis=-1, keepdims=True)
            p = jnp.exp(scores)
            p = p * pl.reciprocal(jnp.sum(p, axis=-1, keepdims=True),
                                  approx=True)
            ctx_h = jnp.einsum('bqk,bkd->bqd', p.astype(MATMUL_DTYPE), vh,
                               preferred_element_type=jnp.float32)    # [B, S, D]
            ctx_heads.append(ctx_h.reshape(BATCH * SEQ, HEAD_DIM))
        # Lane-axis concat (XLU slot, idle here) instead of VMEM scratch stores.
        ctx = jnp.concatenate(ctx_heads, axis=-1)                     # [BS, H]

        attn_out = _mm(ctx, wo_ref[l]) + bo_ref[l]
        x1 = _layer_norm(x + attn_out, g1_ref[l], b1_ref[l])

        # TODO(synk): HF BERT uses exact erf-GELU; tanh approximation used here.
        h1 = jax.nn.gelu(_mm(x1, w1_ref[l]) + bb1_ref[l], approximate=True)
        ffn = _mm(h1, w2_ref[l]) + bb2_ref[l]
        x = _layer_norm(x1 + ffn, g2_ref[l], b2_ref[l])

    # --- masked mean pooling as a single exact-f32 matmul, then L2 normalize ---
    pmat = pmat_ref[...]                                              # [B, B*S] f32
    summed = jnp.dot(pmat, x, preferred_element_type=jnp.float32)     # [B, H]
    denom = jnp.sum(pmat, axis=-1, keepdims=True)                     # [B, 1]
    emb = summed / jnp.maximum(denom, 1e-9)                           # exact divide
    sq = jnp.sum(emb * emb, axis=-1, keepdims=True)
    o_ref[...] = emb * jax.lax.rsqrt(jnp.maximum(sq, 1e-24))          # F.normalize(p=2)


# ---------------- Parameter init (deterministic, synthetic) ----------------
def init_params(key):
    def normal(k, shape):
        return 0.02 * jax.random.normal(k, shape, jnp.float32)

    keys = jax.random.split(key, 3 + NUM_LAYERS)
    params = {
        "word_emb": normal(keys[0], (VOCAB, HIDDEN)),
        "pos_emb": normal(keys[1], (MAX_POS, HIDDEN)),
        "type_emb": normal(keys[2], (2, HIDDEN)),
        "emb_g": jnp.ones((1, HIDDEN), jnp.float32),
        "emb_b": jnp.zeros((1, HIDDEN), jnp.float32),
        "layers": [],
    }
    for l in range(NUM_LAYERS):
        lk = jax.random.split(keys[3 + l], 8)
        lp = {
            "wq": normal(lk[0], (HIDDEN, HIDDEN)), "bq": jnp.zeros((1, HIDDEN), jnp.float32),
            "wk": normal(lk[1], (HIDDEN, HIDDEN)), "bk": jnp.zeros((1, HIDDEN), jnp.float32),
            "wv": normal(lk[2], (HIDDEN, HIDDEN)), "bv": jnp.zeros((1, HIDDEN), jnp.float32),
            "wo": normal(lk[3], (HIDDEN, HIDDEN)), "bo": jnp.zeros((1, HIDDEN), jnp.float32),
            "g1": jnp.ones((1, HIDDEN), jnp.float32), "b1": jnp.zeros((1, HIDDEN), jnp.float32),
            "w1": normal(lk[4], (HIDDEN, INTERMEDIATE)), "bb1": jnp.zeros((1, INTERMEDIATE), jnp.float32),
            "w2": normal(lk[5], (INTERMEDIATE, HIDDEN)), "bb2": jnp.zeros((1, HIDDEN), jnp.float32),
            "g2": jnp.ones((1, HIDDEN), jnp.float32), "b2": jnp.zeros((1, HIDDEN), jnp.float32),
        }
        params["layers"].append(lp)
    return params


# ---------------- Full forward (TextEncoder.forward) ----------------
def text_encoder_forward(params, input_ids, attention_mask):
    B, S = input_ids.shape
    H = HIDDEN

    # Embedding gathers are glue (plain JAX, fused by XLA); dense compute is in
    # Pallas.  Only token-type-0 embedding is added (single-segment inputs).
    tok = params["word_emb"][input_ids]                              # [B, S, H]
    pos = params["pos_emb"][:S][None, :, :]                          # [1, S, H]
    typ = params["type_emb"][0][None, None, :]                       # [1, 1, H]
    x_emb = (tok + pos + typ).reshape(B * S, H).astype(jnp.float32)  # [B*S, H]

    maskf = attention_mask.astype(jnp.float32)                       # [B, S]
    attn_bias = (1.0 - maskf) * -10000.0                             # [B, S]
    # Pooling matrix: pmat[b, b*S + s] = mask[b, s]  (mean-pool as one matmul)
    eye = jnp.eye(B, dtype=jnp.float32)
    pmat = (eye[:, :, None] * maskf[None, :, :]).reshape(B, B * S)   # [B, B*S]

    # Fuse QKV weights/biases and stack per-layer weights along a leading L
    # axis; matmul weights are pre-cast to bf16.
    per_layer = []
    for l in range(NUM_LAYERS):
        lp = params["layers"][l]
        per_layer.append({
            "wqkv": jnp.concatenate([lp["wq"], lp["wk"], lp["wv"]], axis=-1),  # [H, 3H]
            "bqkv": jnp.concatenate([lp["bq"], lp["bk"], lp["bv"]], axis=-1),  # [1, 3H]
            "wo": lp["wo"], "bo": lp["bo"],
            "g1": lp["g1"], "b1": lp["b1"],
            "w1": lp["w1"], "bb1": lp["bb1"],
            "w2": lp["w2"], "bb2": lp["bb2"],
            "g2": lp["g2"], "b2": lp["b2"],
        })
    stacked = []
    for name in STACKED_NAMES:
        w = jnp.stack([per_layer[l][name] for l in range(NUM_LAYERS)], 0)
        if name in MATMUL_WEIGHTS:
            w = w.astype(MATMUL_DTYPE)
        stacked.append(w)

    inputs = [x_emb, attn_bias, pmat, params["emb_g"], params["emb_b"]] + stacked

    flops = NUM_LAYERS * (2 * B * S * H * (4 * H + 2 * INTERMEDIATE)
                          + 4 * B * NUM_HEADS * S * S * HEAD_DIM) \
        + 2 * B * (B * S) * H
    transcendentals = NUM_LAYERS * (B * NUM_HEADS * S * S + B * S * INTERMEDIATE)
    bytes_accessed = sum(int(a.size) * a.dtype.itemsize for a in inputs) + B * H * 4

    out = pl.pallas_call(
        fused_encoder_kernel,
        out_shape=jax.ShapeDtypeStruct((B, H), jnp.float32),
        in_specs=[pl.BlockSpec(memory_space=pltpu.MemorySpace.VMEM)] * len(inputs),
        out_specs=pl.BlockSpec(memory_space=pltpu.MemorySpace.VMEM),
        cost_estimate=pl.CostEstimate(flops=flops,
                                      transcendentals=transcendentals,
                                      bytes_accessed=bytes_accessed),
    )(*inputs)
    return out                                                        # [B, H]


if __name__ == "__main__":
    key = jax.random.PRNGKey(0)
    pkey, ikey = jax.random.split(key)
    params = init_params(pkey)

    # Synthetic "tokenized text": x = {"input_ids", "attention_mask"}
    input_ids = jax.random.randint(ikey, (BATCH, SEQ), 0, VOCAB, dtype=jnp.int32)
    attention_mask = jnp.array(
        [[1, 1, 1, 1, 1, 1, 1, 1],
         [1, 1, 1, 1, 1, 1, 0, 0]], dtype=jnp.int32)

    out = text_encoder_forward(params, input_ids, attention_mask)
    out = jax.block_until_ready(out)
    assert out.shape == (BATCH, HIDDEN)
    # sanity: rows are unit-norm (L2 normalize)
    norms = np.asarray(jnp.linalg.norm(out, axis=1))
    assert np.allclose(norms, 1.0, atol=1e-4), norms
    print("KERNEL_OK")
</pallas_src>

<mosaic_0001>
module attributes {stable_mosaic.version = 11 : i64} {
  func.func @fused_encoder_kernel(%arg0: memref<16x32xf32, #tpu.memory_space<vmem>>, %arg1: memref<2x8xf32, #tpu.memory_space<vmem>>, %arg2: memref<2x16xf32, #tpu.memory_space<vmem>>, %arg3: memref<1x32xf32, #tpu.memory_space<vmem>>, %arg4: memref<1x32xf32, #tpu.memory_space<vmem>>, %arg5: memref<2x32x96xbf16, #tpu.memory_space<vmem>>, %arg6: memref<2x1x96xf32, #tpu.memory_space<vmem>>, %arg7: memref<2x32x32xbf16, #tpu.memory_space<vmem>>, %arg8: memref<2x1x32xf32, #tpu.memory_space<vmem>>, %arg9: memref<2x1x32xf32, #tpu.memory_space<vmem>>, %arg10: memref<2x1x32xf32, #tpu.memory_space<vmem>>, %arg11: memref<2x32x64xbf16, #tpu.memory_space<vmem>>, %arg12: memref<2x1x64xf32, #tpu.memory_space<vmem>>, %arg13: memref<2x64x32xbf16, #tpu.memory_space<vmem>>, %arg14: memref<2x1x32xf32, #tpu.memory_space<vmem>>, %arg15: memref<2x1x32xf32, #tpu.memory_space<vmem>>, %arg16: memref<2x1x32xf32, #tpu.memory_space<vmem>>, %arg17: memref<2x32xf32, #tpu.memory_space<vmem>>) attributes {dimension_semantics = [], scalar_prefetch = 0 : i64, scratch_operands = 0 : i64, tpu.core_type = #tpu.core_type<tc>} {
    %c0 = arith.constant 0 : index
    %c0_0 = arith.constant 0 : index
    %0 = vector.load %arg0[%c0, %c0_0] : memref<16x32xf32, #tpu.memory_space<vmem>>, vector<16x32xf32>
    %c0_1 = arith.constant 0 : index
    %c0_2 = arith.constant 0 : index
    %1 = vector.load %arg3[%c0_1, %c0_2] : memref<1x32xf32, #tpu.memory_space<vmem>>, vector<1x32xf32>
    %c0_3 = arith.constant 0 : index
    %c0_4 = arith.constant 0 : index
    %2 = vector.load %arg4[%c0_3, %c0_4] : memref<1x32xf32, #tpu.memory_space<vmem>>, vector<1x32xf32>
    %cst = arith.constant dense<0.000000e+00> : vector<16xf32>
    %3 = vector.multi_reduction <add>, %0, %cst [1] : vector<16x32xf32> to vector<16xf32>
    %4 = vector.shape_cast %3 : vector<16xf32> to vector<16x1xf32>
    %cst_5 = arith.constant 3.200000e+01 : f32
    %5 = vector.broadcast %cst_5 : f32 to vector<16x1xf32>
    %6 = arith.divf %4, %5 : vector<16x1xf32>
    %7 = vector.broadcast %6 : vector<16x1xf32> to vector<16x32xf32>
    %8 = arith.subf %0, %7 : vector<16x32xf32>
    %9 = arith.mulf %8, %8 : vector<16x32xf32>
    %cst_6 = arith.constant dense<0.000000e+00> : vector<16xf32>
    %10 = vector.multi_reduction <add>, %9, %cst_6 [1] : vector<16x32xf32> to vector<16xf32>
    %11 = vector.shape_cast %10 : vector<16xf32> to vector<16x1xf32>
    %cst_7 = arith.constant 3.200000e+01 : f32
    %12 = vector.broadcast %cst_7 : f32 to vector<16x1xf32>
    %13 = arith.divf %11, %12 : vector<16x1xf32>
    %14 = vector.broadcast %6 : vector<16x1xf32> to vector<16x32xf32>
    %15 = arith.subf %0, %14 : vector<16x32xf32>
    %cst_8 = arith.constant 9.99999996E-13 : f32
    %16 = vector.broadcast %cst_8 : f32 to vector<16x1xf32>
    %17 = arith.addf %13, %16 : vector<16x1xf32>
    %18 = math.rsqrt %17 : vector<16x1xf32>
    %19 = vector.broadcast %18 : vector<16x1xf32> to vector<16x32xf32>
    %20 = arith.mulf %15, %19 : vector<16x32xf32>
    %21 = vector.broadcast %1 : vector<1x32xf32> to vector<16x32xf32>
    %22 = arith.mulf %20, %21 : vector<16x32xf32>
    %23 = vector.broadcast %2 : vector<1x32xf32> to vector<16x32xf32>
    %24 = arith.addf %22, %23 : vector<16x32xf32>
    %c0_9 = arith.constant 0 : index
    %c0_10 = arith.constant 0 : index
    %25 = vector.load %arg1[%c0_9, %c0_10] : memref<2x8xf32, #tpu.memory_space<vmem>>, vector<2x8xf32>
    %26 = vector.shape_cast %25 : vector<2x8xf32> to vector<2x1x8xf32>
    %27 = vector.shape_cast %26 : vector<2x1x8xf32> to vector<2x1x8xf32>
    %28 = vector.broadcast %27 : vector<2x1x8xf32> to vector<2x8x8xf32>
    %c0_11 = arith.constant 0 : index
    %c0_12 = arith.constant 0 : index
    %c0_13 = arith.constant 0 : index
    %29 = vector.load %arg5[%c0_11, %c0_12, %c0_13] : memref<2x32x96xbf16, #tpu.memory_space<vmem>>, vector<1x32x96xbf16>
    %30 = vector.shape_cast %29 : vector<1x32x96xbf16> to vector<32x96xbf16>
    %31 = arith.truncf %24 : vector<16x32xf32> to vector<16x32xbf16>
    %cst_14 = arith.constant dense<0.000000e+00> : vector<16x96xf32>
    %32 = tpu.matmul %31, %30, %cst_14 {dimension_numbers = #tpu.dot_dimension_numbers<[1], [0], [0], [1], [0, 0, 1, 1], [], []>} : vector<16x32xbf16>, vector<32x96xbf16>, vector<16x96xf32> -> vector<16x96xf32>
    %c0_15 = arith.constant 0 : index
    %c0_16 = arith.constant 0 : index
    %c0_17 = arith.constant 0 : index
    %33 = vector.load %arg6[%c0_15, %c0_16, %c0_17] : memref<2x1x96xf32, #tpu.memory_space<vmem>>, vector<1x1x96xf32>
    %34 = vector.shape_cast %33 : vector<1x1x96xf32> to vector<1x96xf32>
    %35 = vector.broadcast %34 : vector<1x96xf32> to vector<16x96xf32>
    %36 = arith.addf %32, %35 : vector<16x96xf32>
    %37 = vector.extract_strided_slice %36 {offsets = [0, 0], sizes = [16, 32], strides = [1, 1]} : vector<16x96xf32> to vector<16x32xf32>
    %38 = vector.extract_strided_slice %36 {offsets = [0, 32], sizes = [16, 32], strides = [1, 1]} : vector<16x96xf32> to vector<16x32xf32>
    %39 = vector.extract_strided_slice %36 {offsets = [0, 64], sizes = [16, 32], strides = [1, 1]} : vector<16x96xf32> to vector<16x32xf32>
    %40 = vector.extract_strided_slice %37 {offsets = [0, 0], sizes = [16, 16], strides = [1, 1]} : vector<16x32xf32> to vector<16x16xf32>
    %41 = vector.shape_cast %40 : vector<16x16xf32> to vector<2x8x16xf32>
    %42 = arith.truncf %41 : vector<2x8x16xf32> to vector<2x8x16xbf16>
    %43 = vector.extract_strided_slice %38 {offsets = [0, 0], sizes = [16, 16], strides = [1, 1]} : vector<16x32xf32> to vector<16x16xf32>
    %44 = vector.shape_cast %43 : vector<16x16xf32> to vector<2x8x16xf32>
    %45 = arith.truncf %44 : vector<2x8x16xf32> to vector<2x8x16xbf16>
    %46 = vector.extract_strided_slice %39 {offsets = [0, 0], sizes = [16, 16], strides = [1, 1]} : vector<16x32xf32> to vector<16x16xf32>
    %47 = vector.shape_cast %46 : vector<16x16xf32> to vector<2x8x16xf32>
    %48 = arith.truncf %47 : vector<2x8x16xf32> to vector<2x8x16xbf16>
    "tpu.trace_start"() <{level = 10 : i32, message = "bqd,bkd->bqk"}> : () -> ()
    %cst_18 = arith.constant dense<0.000000e+00> : vector<2x8x8xf32>
    %49 = tpu.matmul %42, %45, %cst_18 {dimension_numbers = #tpu.dot_dimension_numbers<[2], [2], [1], [1], [0, 0, 0, 1, 1, 1], [0], [0]>} : vector<2x8x16xbf16>, vector<2x8x16xbf16>, vector<2x8x8xf32> -> vector<2x8x8xf32>
    "tpu.trace_stop"() : () -> ()
    %cst_19 = arith.constant 2.500000e-01 : f32
    %50 = vector.broadcast %cst_19 : f32 to vector<2x8x8xf32>
    %51 = arith.mulf %49, %50 : vector<2x8x8xf32>
    %52 = arith.addf %51, %28 : vector<2x8x8xf32>
    %cst_20 = arith.constant dense<0xFF800000> : vector<2x8xf32>
    %53 = vector.multi_reduction <maximumf>, %52, %cst_20 [2] : vector<2x8x8xf32> to vector<2x8xf32>
    %54 = vector.shape_cast %53 : vector<2x8xf32> to vector<2x8x1xf32>
    %55 = vector.broadcast %54 : vector<2x8x1xf32> to vector<2x8x8xf32>
    %56 = arith.subf %52, %55 : vector<2x8x8xf32>
    %57 = math.exp %56 : vector<2x8x8xf32>
    %cst_21 = arith.constant dense<0.000000e+00> : vector<2x8xf32>
    %58 = vector.multi_reduction <add>, %57, %cst_21 [2] : vector<2x8x8xf32> to vector<2x8xf32>
    %59 = vector.shape_cast %58 : vector<2x8xf32> to vector<2x8x1xf32>
    %60 = tpu.reciprocal %59 {approx = true} : vector<2x8x1xf32> -> vector<2x8x1xf32>
    %61 = vector.broadcast %60 : vector<2x8x1xf32> to vector<2x8x8xf32>
    %62 = arith.mulf %57, %61 : vector<2x8x8xf32>
    %63 = arith.truncf %62 : vector<2x8x8xf32> to vector<2x8x8xbf16>
    "tpu.trace_start"() <{level = 10 : i32, message = "bqk,bkd->bqd"}> : () -> ()
    %cst_22 = arith.constant dense<0.000000e+00> : vector<2x8x16xf32>
    %64 = tpu.matmul %63, %48, %cst_22 {dimension_numbers = #tpu.dot_dimension_numbers<[2], [1], [1], [2], [0, 0, 0, 1, 1, 2], [0], [0]>} : vector<2x8x8xbf16>, vector<2x8x16xbf16>, vector<2x8x16xf32> -> vector<2x8x16xf32>
    "tpu.trace_stop"() : () -> ()
    %65 = vector.shape_cast %64 : vector<2x8x16xf32> to vector<16x16xf32>
    %66 = vector.extract_strided_slice %37 {offsets = [0, 16], sizes = [16, 16], strides = [1, 1]} : vector<16x32xf32> to vector<16x16xf32>
    %67 = vector.shape_cast %66 : vector<16x16xf32> to vector<2x8x16xf32>
    %68 = arith.truncf %67 : vector<2x8x16xf32> to vector<2x8x16xbf16>
    %69 = vector.extract_strided_slice %38 {offsets = [0, 16], sizes = [16, 16], strides = [1, 1]} : vector<16x32xf32> to vector<16x16xf32>
    %70 = vector.shape_cast %69 : vector<16x16xf32> to vector<2x8x16xf32>
    %71 = arith.truncf %70 : vector<2x8x16xf32> to vector<2x8x16xbf16>
    %72 = vector.extract_strided_slice %39 {offsets = [0, 16], sizes = [16, 16], strides = [1, 1]} : vector<16x32xf32> to vector<16x16xf32>
    %73 = vector.shape_cast %72 : vector<16x16xf32> to vector<2x8x16xf32>
    %74 = arith.truncf %73 : vector<2x8x16xf32> to vector<2x8x16xbf16>
    "tpu.trace_start"() <{level = 10 : i32, message = "bqd,bkd->bqk"}> : () -> ()
    %cst_23 = arith.constant dense<0.000000e+00> : vector<2x8x8xf32>
    %75 = tpu.matmul %68, %71, %cst_23 {dimension_numbers = #tpu.dot_dimension_numbers<[2], [2], [1], [1], [0, 0, 0, 1, 1, 1], [0], [0]>} : vector<2x8x16xbf16>, vector<2x8x16xbf16>, vector<2x8x8xf32> -> vector<2x8x8xf32>
    "tpu.trace_stop"() : () -> ()
    %cst_24 = arith.constant 2.500000e-01 : f32
    %76 = vector.broadcast %cst_24 : f32 to vector<2x8x8xf32>
    %77 = arith.mulf %75, %76 : vector<2x8x8xf32>
    %78 = arith.addf %77, %28 : vector<2x8x8xf32>
    %cst_25 = arith.constant dense<0xFF800000> : vector<2x8xf32>
    %79 = vector.multi_reduction <maximumf>, %78, %cst_25 [2] : vector<2x8x8xf32> to vector<2x8xf32>
    %80 = vector.shape_cast %79 : vector<2x8xf32> to vector<2x8x1xf32>
    %81 = vector.broadcast %80 : vector<2x8x1xf32> to vector<2x8x8xf32>
    %82 = arith.subf %78, %81 : vector<2x8x8xf32>
    %83 = math.exp %82 : vector<2x8x8xf32>
    %cst_26 = arith.constant dense<0.000000e+00> : vector<2x8xf32>
    %84 = vector.multi_reduction <add>, %83, %cst_26 [2] : vector<2x8x8xf32> to vector<2x8xf32>
    %85 = vector.shape_cast %84 : vector<2x8xf32> to vector<2x8x1xf32>
    %86 = tpu.reciprocal %85 {approx = true} : vector<2x8x1xf32> -> vector<2x8x1xf32>
    %87 = vector.broadcast %86 : vector<2x8x1xf32> to vector<2x8x8xf32>
    %88 = arith.mulf %83, %87 : vector<2x8x8xf32>
    %89 = arith.truncf %88 : vector<2x8x8xf32> to vector<2x8x8xbf16>
    "tpu.trace_start"() <{level = 10 : i32, message = "bqk,bkd->bqd"}> : () -> ()
    %cst_27 = arith.constant dense<0.000000e+00> : vector<2x8x16xf32>
    %90 = tpu.matmul %89, %74, %cst_27 {dimension_numbers = #tpu.dot_dimension_numbers<[2], [1], [1], [2], [0, 0, 0, 1, 1, 2], [0], [0]>} : vector<2x8x8xbf16>, vector<2x8x16xbf16>, vector<2x8x16xf32> -> vector<2x8x16xf32>
    "tpu.trace_stop"() : () -> ()
    %91 = vector.shape_cast %90 : vector<2x8x16xf32> to vector<16x16xf32>
    %92 = tpu.concatenate %65, %91 in 1 : vector<16x16xf32>, vector<16x16xf32> -> vector<16x32xf32>
    %c0_28 = arith.constant 0 : index
    %c0_29 = arith.constant 0 : index
    %c0_30 = arith.constant 0 : index
    %93 = vector.load %arg7[%c0_28, %c0_29, %c0_30] : memref<2x32x32xbf16, #tpu.memory_space<vmem>>, vector<1x32x32xbf16>
    %94 = vector.shape_cast %93 : vector<1x32x32xbf16> to vector<32x32xbf16>
    %95 = arith.truncf %92 : vector<16x32xf32> to vector<16x32xbf16>
    %cst_31 = arith.constant dense<0.000000e+00> : vector<16x32xf32>
    %96 = tpu.matmul %95, %94, %cst_31 {dimension_numbers = #tpu.dot_dimension_numbers<[1], [0], [0], [1], [0, 0, 1, 1], [], []>} : vector<16x32xbf16>, vector<32x32xbf16>, vector<16x32xf32> -> vector<16x32xf32>
    %c0_32 = arith.constant 0 : index
    %c0_33 = arith.constant 0 : index
    %c0_34 = arith.constant 0 : index
    %97 = vector.load %arg8[%c0_32, %c0_33, %c0_34] : memref<2x1x32xf32, #tpu.memory_space<vmem>>, vector<1x1x32xf32>
    %98 = vector.shape_cast %97 : vector<1x1x32xf32> to vector<1x32xf32>
    %99 = vector.broadcast %98 : vector<1x32xf32> to vector<16x32xf32>
    %100 = arith.addf %96, %99 : vector<16x32xf32>
    %101 = arith.addf %24, %100 : vector<16x32xf32>
    %c0_35 = arith.constant 0 : index
    %c0_36 = arith.constant 0 : index
    %c0_37 = arith.constant 0 : index
    %102 = vector.load %arg9[%c0_35, %c0_36, %c0_37] : memref<2x1x32xf32, #tpu.memory_space<vmem>>, vector<1x1x32xf32>
    %103 = vector.shape_cast %102 : vector<1x1x32xf32> to vector<1x32xf32>
    %c0_38 = arith.constant 0 : index
    %c0_39 = arith.constant 0 : index
    %c0_40 = arith.constant 0 : index
    %104 = vector.load %arg10[%c0_38, %c0_39, %c0_40] : memref<2x1x32xf32, #tpu.memory_space<vmem>>, vector<1x1x32xf32>
    %105 = vector.shape_cast %104 : vector<1x1x32xf32> to vector<1x32xf32>
    %cst_41 = arith.constant dense<0.000000e+00> : vector<16xf32>
    %106 = vector.multi_reduction <add>, %101, %cst_41 [1] : vector<16x32xf32> to vector<16xf32>
    %107 = vector.shape_cast %106 : vector<16xf32> to vector<16x1xf32>
    %cst_42 = arith.constant 3.200000e+01 : f32
    %108 = vector.broadcast %cst_42 : f32 to vector<16x1xf32>
    %109 = arith.divf %107, %108 : vector<16x1xf32>
    %110 = vector.broadcast %109 : vector<16x1xf32> to vector<16x32xf32>
    %111 = arith.subf %101, %110 : vector<16x32xf32>
    %112 = arith.mulf %111, %111 : vector<16x32xf32>
    %cst_43 = arith.constant dense<0.000000e+00> : vector<16xf32>
    %113 = vector.multi_reduction <add>, %112, %cst_43 [1] : vector<16x32xf32> to vector<16xf32>
    %114 = vector.shape_cast %113 : vector<16xf32> to vector<16x1xf32>
    %cst_44 = arith.constant 3.200000e+01 : f32
    %115 = vector.broadcast %cst_44 : f32 to vector<16x1xf32>
    %116 = arith.divf %114, %115 : vector<16x1xf32>
    %117 = vector.broadcast %109 : vector<16x1xf32> to vector<16x32xf32>
    %118 = arith.subf %101, %117 : vector<16x32xf32>
    %cst_45 = arith.constant 9.99999996E-13 : f32
    %119 = vector.broadcast %cst_45 : f32 to vector<16x1xf32>
    %120 = arith.addf %116, %119 : vector<16x1xf32>
    %121 = math.rsqrt %120 : vector<16x1xf32>
    %122 = vector.broadcast %121 : vector<16x1xf32> to vector<16x32xf32>
    %123 = arith.mulf %118, %122 : vector<16x32xf32>
    %124 = vector.broadcast %103 : vector<1x32xf32> to vector<16x32xf32>
    %125 = arith.mulf %123, %124 : vector<16x32xf32>
    %126 = vector.broadcast %105 : vector<1x32xf32> to vector<16x32xf32>
    %127 = arith.addf %125, %126 : vector<16x32xf32>
    %c0_46 = arith.constant 0 : index
    %c0_47 = arith.constant 0 : index
    %c0_48 = arith.constant 0 : index
    %128 = vector.load %arg11[%c0_46, %c0_47, %c0_48] : memref<2x32x64xbf16, #tpu.memory_space<vmem>>, vector<1x32x64xbf16>
    %129 = vector.shape_cast %128 : vector<1x32x64xbf16> to vector<32x64xbf16>
    %130 = arith.truncf %127 : vector<16x32xf32> to vector<16x32xbf16>
    %cst_49 = arith.constant dense<0.000000e+00> : vector<16x64xf32>
    %131 = tpu.matmul %130, %129, %cst_49 {dimension_numbers = #tpu.dot_dimension_numbers<[1], [0], [0], [1], [0, 0, 1, 1], [], []>} : vector<16x32xbf16>, vector<32x64xbf16>, vector<16x64xf32> -> vector<16x64xf32>
    %c0_50 = arith.constant 0 : index
    %c0_51 = arith.constant 0 : index
    %c0_52 = arith.constant 0 : index
    %132 = vector.load %arg12[%c0_50, %c0_51, %c0_52] : memref<2x1x64xf32, #tpu.memory_space<vmem>>, vector<1x1x64xf32>
    %133 = vector.shape_cast %132 : vector<1x1x64xf32> to vector<1x64xf32>
    %134 = vector.broadcast %133 : vector<1x64xf32> to vector<16x64xf32>
    %135 = arith.addf %131, %134 : vector<16x64xf32>
    %136 = arith.mulf %135, %135 : vector<16x64xf32>
    %137 = arith.mulf %135, %136 : vector<16x64xf32>
    %cst_53 = arith.constant 4.471500e-02 : f32
    %138 = vector.broadcast %cst_53 : f32 to vector<16x64xf32>
    %139 = arith.mulf %138, %137 : vector<16x64xf32>
    %140 = arith.addf %135, %139 : vector<16x64xf32>
    %cst_54 = arith.constant 0.797884583 : f32
    %141 = vector.broadcast %cst_54 : f32 to vector<16x64xf32>
    %142 = arith.mulf %141, %140 : vector<16x64xf32>
    %143 = math.tanh %142 : vector<16x64xf32>
    %cst_55 = arith.constant 1.000000e+00 : f32
    %144 = vector.broadcast %cst_55 : f32 to vector<16x64xf32>
    %145 = arith.addf %144, %143 : vector<16x64xf32>
    %cst_56 = arith.constant 5.000000e-01 : f32
    %146 = vector.broadcast %cst_56 : f32 to vector<16x64xf32>
    %147 = arith.mulf %146, %145 : vector<16x64xf32>
    %148 = arith.mulf %135, %147 : vector<16x64xf32>
    %c0_57 = arith.constant 0 : index
    %c0_58 = arith.constant 0 : index
    %c0_59 = arith.constant 0 : index
    %149 = vector.load %arg13[%c0_57, %c0_58, %c0_59] : memref<2x64x32xbf16, #tpu.memory_space<vmem>>, vector<1x64x32xbf16>
    %150 = vector.shape_cast %149 : vector<1x64x32xbf16> to vector<64x32xbf16>
    %151 = arith.truncf %148 : vector<16x64xf32> to vector<16x64xbf16>
    %cst_60 = arith.constant dense<0.000000e+00> : vector<16x32xf32>
    %152 = tpu.matmul %151, %150, %cst_60 {dimension_numbers = #tpu.dot_dimension_numbers<[1], [0], [0], [1], [0, 0, 1, 1], [], []>} : vector<16x64xbf16>, vector<64x32xbf16>, vector<16x32xf32> -> vector<16x32xf32>
    %c0_61 = arith.constant 0 : index
    %c0_62 = arith.constant 0 : index
    %c0_63 = arith.constant 0 : index
    %153 = vector.load %arg14[%c0_61, %c0_62, %c0_63] : memref<2x1x32xf32, #tpu.memory_space<vmem>>, vector<1x1x32xf32>
    %154 = vector.shape_cast %153 : vector<1x1x32xf32> to vector<1x32xf32>
    %155 = vector.broadcast %154 : vector<1x32xf32> to vector<16x32xf32>
    %156 = arith.addf %152, %155 : vector<16x32xf32>
    %157 = arith.addf %127, %156 : vector<16x32xf32>
    %c0_64 = arith.constant 0 : index
    %c0_65 = arith.constant 0 : index
    %c0_66 = arith.constant 0 : index
    %158 = vector.load %arg15[%c0_64, %c0_65, %c0_66] : memref<2x1x32xf32, #tpu.memory_space<vmem>>, vector<1x1x32xf32>
    %159 = vector.shape_cast %158 : vector<1x1x32xf32> to vector<1x32xf32>
    %c0_67 = arith.constant 0 : index
    %c0_68 = arith.constant 0 : index
    %c0_69 = arith.constant 0 : index
    %160 = vector.load %arg16[%c0_67, %c0_68, %c0_69] : memref<2x1x32xf32, #tpu.memory_space<vmem>>, vector<1x1x32xf32>
    %161 = vector.shape_cast %160 : vector<1x1x32xf32> to vector<1x32xf32>
    %cst_70 = arith.constant dense<0.000000e+00> : vector<16xf32>
    %162 = vector.multi_reduction <add>, %157, %cst_70 [1] : vector<16x32xf32> to vector<16xf32>
    %163 = vector.shape_cast %162 : vector<16xf32> to vector<16x1xf32>
    %cst_71 = arith.constant 3.200000e+01 : f32
    %164 = vector.broadcast %cst_71 : f32 to vector<16x1xf32>
    %165 = arith.divf %163, %164 : vector<16x1xf32>
    %166 = vector.broadcast %165 : vector<16x1xf32> to vector<16x32xf32>
    %167 = arith.subf %157, %166 : vector<16x32xf32>
    %168 = arith.mulf %167, %167 : vector<16x32xf32>
    %cst_72 = arith.constant dense<0.000000e+00> : vector<16xf32>
    %169 = vector.multi_reduction <add>, %168, %cst_72 [1] : vector<16x32xf32> to vector<16xf32>
    %170 = vector.shape_cast %169 : vector<16xf32> to vector<16x1xf32>
    %cst_73 = arith.constant 3.200000e+01 : f32
    %171 = vector.broadcast %cst_73 : f32 to vector<16x1xf32>
    %172 = arith.divf %170, %171 : vector<16x1xf32>
    %173 = vector.broadcast %165 : vector<16x1xf32> to vector<16x32xf32>
    %174 = arith.subf %157, %173 : vector<16x32xf32>
    %cst_74 = arith.constant 9.99999996E-13 : f32
    %175 = vector.broadcast %cst_74 : f32 to vector<16x1xf32>
    %176 = arith.addf %172, %175 : vector<16x1xf32>
    %177 = math.rsqrt %176 : vector<16x1xf32>
    %178 = vector.broadcast %177 : vector<16x1xf32> to vector<16x32xf32>
    %179 = arith.mulf %174, %178 : vector<16x32xf32>
    %180 = vector.broadcast %159 : vector<1x32xf32> to vector<16x32xf32>
    %181 = arith.mulf %179, %180 : vector<16x32xf32>
    %182 = vector.broadcast %161 : vector<1x32xf32> to vector<16x32xf32>
    %183 = arith.addf %181, %182 : vector<16x32xf32>
    %c1 = arith.constant 1 : index
    %c0_75 = arith.constant 0 : index
    %c0_76 = arith.constant 0 : index
    %184 = vector.load %arg5[%c1, %c0_75, %c0_76] : memref<2x32x96xbf16, #tpu.memory_space<vmem>>, vector<1x32x96xbf16>
    %185 = vector.shape_cast %184 : vector<1x32x96xbf16> to vector<32x96xbf16>
    %186 = arith.truncf %183 : vector<16x32xf32> to vector<16x32xbf16>
    %cst_77 = arith.constant dense<0.000000e+00> : vector<16x96xf32>
    %187 = tpu.matmul %186, %185, %cst_77 {dimension_numbers = #tpu.dot_dimension_numbers<[1], [0], [0], [1], [0, 0, 1, 1], [], []>} : vector<16x32xbf16>, vector<32x96xbf16>, vector<16x96xf32> -> vector<16x96xf32>
    %c1_78 = arith.constant 1 : index
    %c0_79 = arith.constant 0 : index
    %c0_80 = arith.constant 0 : index
    %188 = vector.load %arg6[%c1_78, %c0_79, %c0_80] : memref<2x1x96xf32, #tpu.memory_space<vmem>>, vector<1x1x96xf32>
    %189 = vector.shape_cast %188 : vector<1x1x96xf32> to vector<1x96xf32>
    %190 = vector.broadcast %189 : vector<1x96xf32> to vector<16x96xf32>
    %191 = arith.addf %187, %190 : vector<16x96xf32>
    %192 = vector.extract_strided_slice %191 {offsets = [0, 0], sizes = [16, 32], strides = [1, 1]} : vector<16x96xf32> to vector<16x32xf32>
    %193 = vector.extract_strided_slice %191 {offsets = [0, 32], sizes = [16, 32], strides = [1, 1]} : vector<16x96xf32> to vector<16x32xf32>
    %194 = vector.extract_strided_slice %191 {offsets = [0, 64], sizes = [16, 32], strides = [1, 1]} : vector<16x96xf32> to vector<16x32xf32>
    %195 = vector.extract_strided_slice %192 {offsets = [0, 0], sizes = [16, 16], strides = [1, 1]} : vector<16x32xf32> to vector<16x16xf32>
    %196 = vector.shape_cast %195 : vector<16x16xf32> to vector<2x8x16xf32>
    %197 = arith.truncf %196 : vector<2x8x16xf32> to vector<2x8x16xbf16>
    %198 = vector.extract_strided_slice %193 {offsets = [0, 0], sizes = [16, 16], strides = [1, 1]} : vector<16x32xf32> to vector<16x16xf32>
    %199 = vector.shape_cast %198 : vector<16x16xf32> to vector<2x8x16xf32>
    %200 = arith.truncf %199 : vector<2x8x16xf32> to vector<2x8x16xbf16>
    %201 = vector.extract_strided_slice %194 {offsets = [0, 0], sizes = [16, 16], strides = [1, 1]} : vector<16x32xf32> to vector<16x16xf32>
    %202 = vector.shape_cast %201 : vector<16x16xf32> to vector<2x8x16xf32>
    %203 = arith.truncf %202 : vector<2x8x16xf32> to vector<2x8x16xbf16>
    "tpu.trace_start"() <{level = 10 : i32, message = "bqd,bkd->bqk"}> : () -> ()
    %cst_81 = arith.constant dense<0.000000e+00> : vector<2x8x8xf32>
    %204 = tpu.matmul %197, %200, %cst_81 {dimension_numbers = #tpu.dot_dimension_numbers<[2], [2], [1], [1], [0, 0, 0, 1, 1, 1], [0], [0]>} : vector<2x8x16xbf16>, vector<2x8x16xbf16>, vector<2x8x8xf32> -> vector<2x8x8xf32>
    "tpu.trace_stop"() : () -> ()
    %cst_82 = arith.constant 2.500000e-01 : f32
    %205 = vector.broadcast %cst_82 : f32 to vector<2x8x8xf32>
    %206 = arith.mulf %204, %205 : vector<2x8x8xf32>
    %207 = arith.addf %206, %28 : vector<2x8x8xf32>
    %cst_83 = arith.constant dense<0xFF800000> : vector<2x8xf32>
    %208 = vector.multi_reduction <maximumf>, %207, %cst_83 [2] : vector<2x8x8xf32> to vector<2x8xf32>
    %209 = vector.shape_cast %208 : vector<2x8xf32> to vector<2x8x1xf32>
    %210 = vector.broadcast %209 : vector<2x8x1xf32> to vector<2x8x8xf32>
    %211 = arith.subf %207, %210 : vector<2x8x8xf32>
    %212 = math.exp %211 : vector<2x8x8xf32>
    %cst_84 = arith.constant dense<0.000000e+00> : vector<2x8xf32>
    %213 = vector.multi_reduction <add>, %212, %cst_84 [2] : vector<2x8x8xf32> to vector<2x8xf32>
    %214 = vector.shape_cast %213 : vector<2x8xf32> to vector<2x8x1xf32>
    %215 = tpu.reciprocal %214 {approx = true} : vector<2x8x1xf32> -> vector<2x8x1xf32>
    %216 = vector.broadcast %215 : vector<2x8x1xf32> to vector<2x8x8xf32>
    %217 = arith.mulf %212, %216 : vector<2x8x8xf32>
    %218 = arith.truncf %217 : vector<2x8x8xf32> to vector<2x8x8xbf16>
    "tpu.trace_start"() <{level = 10 : i32, message = "bqk,bkd->bqd"}> : () -> ()
    %cst_85 = arith.constant dense<0.000000e+00> : vector<2x8x16xf32>
    %219 = tpu.matmul %218, %203, %cst_85 {dimension_numbers = #tpu.dot_dimension_numbers<[2], [1], [1], [2], [0, 0, 0, 1, 1, 2], [0], [0]>} : vector<2x8x8xbf16>, vector<2x8x16xbf16>, vector<2x8x16xf32> -> vector<2x8x16xf32>
    "tpu.trace_stop"() : () -> ()
    %220 = vector.shape_cast %219 : vector<2x8x16xf32> to vector<16x16xf32>
    %221 = vector.extract_strided_slice %192 {offsets = [0, 16], sizes = [16, 16], strides = [1, 1]} : vector<16x32xf32> to vector<16x16xf32>
    %222 = vector.shape_cast %221 : vector<16x16xf32> to vector<2x8x16xf32>
    %223 = arith.truncf %222 : vector<2x8x16xf32> to vector<2x8x16xbf16>
    %224 = vector.extract_strided_slice %193 {offsets = [0, 16], sizes = [16, 16], strides = [1, 1]} : vector<16x32xf32> to vector<16x16xf32>
    %225 = vector.shape_cast %224 : vector<16x16xf32> to vector<2x8x16xf32>
    %226 = arith.truncf %225 : vector<2x8x16xf32> to vector<2x8x16xbf16>
    %227 = vector.extract_strided_slice %194 {offsets = [0, 16], sizes = [16, 16], strides = [1, 1]} : vector<16x32xf32> to vector<16x16xf32>
    %228 = vector.shape_cast %227 : vector<16x16xf32> to vector<2x8x16xf32>
    %229 = arith.truncf %228 : vector<2x8x16xf32> to vector<2x8x16xbf16>
    "tpu.trace_start"() <{level = 10 : i32, message = "bqd,bkd->bqk"}> : () -> ()
    %cst_86 = arith.constant dense<0.000000e+00> : vector<2x8x8xf32>
    %230 = tpu.matmul %223, %226, %cst_86 {dimension_numbers = #tpu.dot_dimension_numbers<[2], [2], [1], [1], [0, 0, 0, 1, 1, 1], [0], [0]>} : vector<2x8x16xbf16>, vector<2x8x16xbf16>, vector<2x8x8xf32> -> vector<2x8x8xf32>
    "tpu.trace_stop"() : () -> ()
    %cst_87 = arith.constant 2.500000e-01 : f32
    %231 = vector.broadcast %cst_87 : f32 to vector<2x8x8xf32>
    %232 = arith.mulf %230, %231 : vector<2x8x8xf32>
    %233 = arith.addf %232, %28 : vector<2x8x8xf32>
    %cst_88 = arith.constant dense<0xFF800000> : vector<2x8xf32>
    %234 = vector.multi_reduction <maximumf>, %233, %cst_88 [2] : vector<2x8x8xf32> to vector<2x8xf32>
    %235 = vector.shape_cast %234 : vector<2x8xf32> to vector<2x8x1xf32>
    %236 = vector.broadcast %235 : vector<2x8x1xf32> to vector<2x8x8xf32>
    %237 = arith.subf %233, %236 : vector<2x8x8xf32>
    %238 = math.exp %237 : vector<2x8x8xf32>
    %cst_89 = arith.constant dense<0.000000e+00> : vector<2x8xf32>
    %239 = vector.multi_reduction <add>, %238, %cst_89 [2] : vector<2x8x8xf32> to vector<2x8xf32>
    %240 = vector.shape_cast %239 : vector<2x8xf32> to vector<2x8x1xf32>
    %241 = tpu.reciprocal %240 {approx = true} : vector<2x8x1xf32> -> vector<2x8x1xf32>
    %242 = vector.broadcast %241 : vector<2x8x1xf32> to vector<2x8x8xf32>
    %243 = arith.mulf %238, %242 : vector<2x8x8xf32>
    %244 = arith.truncf %243 : vector<2x8x8xf32> to vector<2x8x8xbf16>
    "tpu.trace_start"() <{level = 10 : i32, message = "bqk,bkd->bqd"}> : () -> ()
    %cst_90 = arith.constant dense<0.000000e+00> : vector<2x8x16xf32>
    %245 = tpu.matmul %244, %229, %cst_90 {dimension_numbers = #tpu.dot_dimension_numbers<[2], [1], [1], [2], [0, 0, 0, 1, 1, 2], [0], [0]>} : vector<2x8x8xbf16>, vector<2x8x16xbf16>, vector<2x8x16xf32> -> vector<2x8x16xf32>
    "tpu.trace_stop"() : () -> ()
    %246 = vector.shape_cast %245 : vector<2x8x16xf32> to vector<16x16xf32>
    %247 = tpu.concatenate %220, %246 in 1 : vector<16x16xf32>, vector<16x16xf32> -> vector<16x32xf32>
    %c1_91 = arith.constant 1 : index
    %c0_92 = arith.constant 0 : index
    %c0_93 = arith.constant 0 : index
    %248 = vector.load %arg7[%c1_91, %c0_92, %c0_93] : memref<2x32x32xbf16, #tpu.memory_space<vmem>>, vector<1x32x32xbf16>
    %249 = vector.shape_cast %248 : vector<1x32x32xbf16> to vector<32x32xbf16>
    %250 = arith.truncf %247 : vector<16x32xf32> to vector<16x32xbf16>
    %cst_94 = arith.constant dense<0.000000e+00> : vector<16x32xf32>
    %251 = tpu.matmul %250, %249, %cst_94 {dimension_numbers = #tpu.dot_dimension_numbers<[1], [0], [0], [1], [0, 0, 1, 1], [], []>} : vector<16x32xbf16>, vector<32x32xbf16>, vector<16x32xf32> -> vector<16x32xf32>
    %c1_95 = arith.constant 1 : index
    %c0_96 = arith.constant 0 : index
    %c0_97 = arith.constant 0 : index
    %252 = vector.load %arg8[%c1_95, %c0_96, %c0_97] : memref<2x1x32xf32, #tpu.memory_space<vmem>>, vector<1x1x32xf32>
    %253 = vector.shape_cast %252 : vector<1x1x32xf32> to vector<1x32xf32>
    %254 = vector.broadcast %253 : vector<1x32xf32> to vector<16x32xf32>
    %255 = arith.addf %251, %254 : vector<16x32xf32>
    %256 = arith.addf %183, %255 : vector<16x32xf32>
    %c1_98 = arith.constant 1 : index
    %c0_99 = arith.constant 0 : index
    %c0_100 = arith.constant 0 : index
    %257 = vector.load %arg9[%c1_98, %c0_99, %c0_100] : memref<2x1x32xf32, #tpu.memory_space<vmem>>, vector<1x1x32xf32>
    %258 = vector.shape_cast %257 : vector<1x1x32xf32> to vector<1x32xf32>
    %c1_101 = arith.constant 1 : index
    %c0_102 = arith.constant 0 : index
    %c0_103 = arith.constant 0 : index
    %259 = vector.load %arg10[%c1_101, %c0_102, %c0_103] : memref<2x1x32xf32, #tpu.memory_space<vmem>>, vector<1x1x32xf32>
    %260 = vector.shape_cast %259 : vector<1x1x32xf32> to vector<1x32xf32>
    %cst_104 = arith.constant dense<0.000000e+00> : vector<16xf32>
    %261 = vector.multi_reduction <add>, %256, %cst_104 [1] : vector<16x32xf32> to vector<16xf32>
    %262 = vector.shape_cast %261 : vector<16xf32> to vector<16x1xf32>
    %cst_105 = arith.constant 3.200000e+01 : f32
    %263 = vector.broadcast %cst_105 : f32 to vector<16x1xf32>
    %264 = arith.divf %262, %263 : vector<16x1xf32>
    %265 = vector.broadcast %264 : vector<16x1xf32> to vector<16x32xf32>
    %266 = arith.subf %256, %265 : vector<16x32xf32>
    %267 = arith.mulf %266, %266 : vector<16x32xf32>
    %cst_106 = arith.constant dense<0.000000e+00> : vector<16xf32>
    %268 = vector.multi_reduction <add>, %267, %cst_106 [1] : vector<16x32xf32> to vector<16xf32>
    %269 = vector.shape_cast %268 : vector<16xf32> to vector<16x1xf32>
    %cst_107 = arith.constant 3.200000e+01 : f32
    %270 = vector.broadcast %cst_107 : f32 to vector<16x1xf32>
    %271 = arith.divf %269, %270 : vector<16x1xf32>
    %272 = vector.broadcast %264 : vector<16x1xf32> to vector<16x32xf32>
    %273 = arith.subf %256, %272 : vector<16x32xf32>
    %cst_108 = arith.constant 9.99999996E-13 : f32
    %274 = vector.broadcast %cst_108 : f32 to vector<16x1xf32>
    %275 = arith.addf %271, %274 : vector<16x1xf32>
    %276 = math.rsqrt %275 : vector<16x1xf32>
    %277 = vector.broadcast %276 : vector<16x1xf32> to vector<16x32xf32>
    %278 = arith.mulf %273, %277 : vector<16x32xf32>
    %279 = vector.broadcast %258 : vector<1x32xf32> to vector<16x32xf32>
    %280 = arith.mulf %278, %279 : vector<16x32xf32>
    %281 = vector.broadcast %260 : vector<1x32xf32> to vector<16x32xf32>
    %282 = arith.addf %280, %281 : vector<16x32xf32>
    %c1_109 = arith.constant 1 : index
    %c0_110 = arith.constant 0 : index
    %c0_111 = arith.constant 0 : index
    %283 = vector.load %arg11[%c1_109, %c0_110, %c0_111] : memref<2x32x64xbf16, #tpu.memory_space<vmem>>, vector<1x32x64xbf16>
    %284 = vector.shape_cast %283 : vector<1x32x64xbf16> to vector<32x64xbf16>
    %285 = arith.truncf %282 : vector<16x32xf32> to vector<16x32xbf16>
    %cst_112 = arith.constant dense<0.000000e+00> : vector<16x64xf32>
    %286 = tpu.matmul %285, %284, %cst_112 {dimension_numbers = #tpu.dot_dimension_numbers<[1], [0], [0], [1], [0, 0, 1, 1], [], []>} : vector<16x32xbf16>, vector<32x64xbf16>, vector<16x64xf32> -> vector<16x64xf32>
    %c1_113 = arith.constant 1 : index
    %c0_114 = arith.constant 0 : index
    %c0_115 = arith.constant 0 : index
    %287 = vector.load %arg12[%c1_113, %c0_114, %c0_115] : memref<2x1x64xf32, #tpu.memory_space<vmem>>, vector<1x1x64xf32>
    %288 = vector.shape_cast %287 : vector<1x1x64xf32> to vector<1x64xf32>
    %289 = vector.broadcast %288 : vector<1x64xf32> to vector<16x64xf32>
    %290 = arith.addf %286, %289 : vector<16x64xf32>
    %291 = arith.mulf %290, %290 : vector<16x64xf32>
    %292 = arith.mulf %290, %291 : vector<16x64xf32>
    %cst_116 = arith.constant 4.471500e-02 : f32
    %293 = vector.broadcast %cst_116 : f32 to vector<16x64xf32>
    %294 = arith.mulf %293, %292 : vector<16x64xf32>
    %295 = arith.addf %290, %294 : vector<16x64xf32>
    %cst_117 = arith.constant 0.797884583 : f32
    %296 = vector.broadcast %cst_117 : f32 to vector<16x64xf32>
    %297 = arith.mulf %296, %295 : vector<16x64xf32>
    %298 = math.tanh %297 : vector<16x64xf32>
    %cst_118 = arith.constant 1.000000e+00 : f32
    %299 = vector.broadcast %cst_118 : f32 to vector<16x64xf32>
    %300 = arith.addf %299, %298 : vector<16x64xf32>
    %cst_119 = arith.constant 5.000000e-01 : f32
    %301 = vector.broadcast %cst_119 : f32 to vector<16x64xf32>
    %302 = arith.mulf %301, %300 : vector<16x64xf32>
    %303 = arith.mulf %290, %302 : vector<16x64xf32>
    %c1_120 = arith.constant 1 : index
    %c0_121 = arith.constant 0 : index
    %c0_122 = arith.constant 0 : index
    %304 = vector.load %arg13[%c1_120, %c0_121, %c0_122] : memref<2x64x32xbf16, #tpu.memory_space<vmem>>, vector<1x64x32xbf16>
    %305 = vector.shape_cast %304 : vector<1x64x32xbf16> to vector<64x32xbf16>
    %306 = arith.truncf %303 : vector<16x64xf32> to vector<16x64xbf16>
    %cst_123 = arith.constant dense<0.000000e+00> : vector<16x32xf32>
    %307 = tpu.matmul %306, %305, %cst_123 {dimension_numbers = #tpu.dot_dimension_numbers<[1], [0], [0], [1], [0, 0, 1, 1], [], []>} : vector<16x64xbf16>, vector<64x32xbf16>, vector<16x32xf32> -> vector<16x32xf32>
    %c1_124 = arith.constant 1 : index
    %c0_125 = arith.constant 0 : index
    %c0_126 = arith.constant 0 : index
    %308 = vector.load %arg14[%c1_124, %c0_125, %c0_126] : memref<2x1x32xf32, #tpu.memory_space<vmem>>, vector<1x1x32xf32>
    %309 = vector.shape_cast %308 : vector<1x1x32xf32> to vector<1x32xf32>
    %310 = vector.broadcast %309 : vector<1x32xf32> to vector<16x32xf32>
    %311 = arith.addf %307, %310 : vector<16x32xf32>
    %312 = arith.addf %282, %311 : vector<16x32xf32>
    %c1_127 = arith.constant 1 : index
    %c0_128 = arith.constant 0 : index
    %c0_129 = arith.constant 0 : index
    %313 = vector.load %arg15[%c1_127, %c0_128, %c0_129] : memref<2x1x32xf32, #tpu.memory_space<vmem>>, vector<1x1x32xf32>
    %314 = vector.shape_cast %313 : vector<1x1x32xf32> to vector<1x32xf32>
    %c1_130 = arith.constant 1 : index
    %c0_131 = arith.constant 0 : index
    %c0_132 = arith.constant 0 : index
    %315 = vector.load %arg16[%c1_130, %c0_131, %c0_132] : memref<2x1x32xf32, #tpu.memory_space<vmem>>, vector<1x1x32xf32>
    %316 = vector.shape_cast %315 : vector<1x1x32xf32> to vector<1x32xf32>
    %cst_133 = arith.constant dense<0.000000e+00> : vector<16xf32>
    %317 = vector.multi_reduction <add>, %312, %cst_133 [1] : vector<16x32xf32> to vector<16xf32>
    %318 = vector.shape_cast %317 : vector<16xf32> to vector<16x1xf32>
    %cst_134 = arith.constant 3.200000e+01 : f32
    %319 = vector.broadcast %cst_134 : f32 to vector<16x1xf32>
    %320 = arith.divf %318, %319 : vector<16x1xf32>
    %321 = vector.broadcast %320 : vector<16x1xf32> to vector<16x32xf32>
    %322 = arith.subf %312, %321 : vector<16x32xf32>
    %323 = arith.mulf %322, %322 : vector<16x32xf32>
    %cst_135 = arith.constant dense<0.000000e+00> : vector<16xf32>
    %324 = vector.multi_reduction <add>, %323, %cst_135 [1] : vector<16x32xf32> to vector<16xf32>
    %325 = vector.shape_cast %324 : vector<16xf32> to vector<16x1xf32>
    %cst_136 = arith.constant 3.200000e+01 : f32
    %326 = vector.broadcast %cst_136 : f32 to vector<16x1xf32>
    %327 = arith.divf %325, %326 : vector<16x1xf32>
    %328 = vector.broadcast %320 : vector<16x1xf32> to vector<16x32xf32>
    %329 = arith.subf %312, %328 : vector<16x32xf32>
    %cst_137 = arith.constant 9.99999996E-13 : f32
    %330 = vector.broadcast %cst_137 : f32 to vector<16x1xf32>
    %331 = arith.addf %327, %330 : vector<16x1xf32>
    %332 = math.rsqrt %331 : vector<16x1xf32>
    %333 = vector.broadcast %332 : vector<16x1xf32> to vector<16x32xf32>
    %334 = arith.mulf %329, %333 : vector<16x32xf32>
    %335 = vector.broadcast %314 : vector<1x32xf32> to vector<16x32xf32>
    %336 = arith.mulf %334, %335 : vector<16x32xf32>
    %337 = vector.broadcast %316 : vector<1x32xf32> to vector<16x32xf32>
    %338 = arith.addf %336, %337 : vector<16x32xf32>
    %c0_138 = arith.constant 0 : index
    %c0_139 = arith.constant 0 : index
    %339 = vector.load %arg2[%c0_138, %c0_139] : memref<2x16xf32, #tpu.memory_space<vmem>>, vector<2x16xf32>
    %cst_140 = arith.constant dense<0.000000e+00> : vector<2x32xf32>
    %340 = tpu.matmul %339, %338, %cst_140 {dimension_numbers = #tpu.dot_dimension_numbers<[1], [0], [0], [1], [0, 0, 1, 1], [], []>} : vector<2x16xf32>, vector<16x32xf32>, vector<2x32xf32> -> vector<2x32xf32>
    %cst_141 = arith.constant dense<0.000000e+00> : vector<2xf32>
    %341 = vector.multi_reduction <add>, %339, %cst_141 [1] : vector<2x16xf32> to vector<2xf32>
    %342 = vector.shape_cast %341 : vector<2xf32> to vector<2x1xf32>
    %cst_142 = arith.constant 9.99999971E-10 : f32
    %343 = vector.broadcast %cst_142 : f32 to vector<2x1xf32>
    %344 = arith.maximumf %342, %343 : vector<2x1xf32>
    %345 = vector.broadcast %344 : vector<2x1xf32> to vector<2x32xf32>
    %346 = arith.divf %340, %345 : vector<2x32xf32>
    %347 = arith.mulf %346, %346 : vector<2x32xf32>
    %cst_143 = arith.constant dense<0.000000e+00> : vector<2xf32>
    %348 = vector.multi_reduction <add>, %347, %cst_143 [1] : vector<2x32xf32> to vector<2xf32>
    %349 = vector.shape_cast %348 : vector<2xf32> to vector<2x1xf32>
    %cst_144 = arith.constant 1.000000e-24 : f32
    %350 = vector.broadcast %cst_144 : f32 to vector<2x1xf32>
    %351 = arith.maximumf %349, %350 : vector<2x1xf32>
    %352 = math.rsqrt %351 : vector<2x1xf32>
    %353 = vector.broadcast %352 : vector<2x1xf32> to vector<2x32xf32>
    %354 = arith.mulf %346, %353 : vector<2x32xf32>
    %c0_145 = arith.constant 0 : index
    %c0_146 = arith.constant 0 : index
    %355 = vector.load %arg17[%c0_145, %c0_146] : memref<2x32xf32, #tpu.memory_space<vmem>>, vector<2x32xf32>
    tpu.vector_store %arg17[%c0_145, %c0_146], %354 {strides = array<i32>} : memref<2x32xf32, #tpu.memory_space<vmem>>, vector<2x32xf32>,
    return
  }
}

</mosaic_0001>

<llo_original>
// kernel: tpu_custom_call.1
$region0: #{tpu_custom_call.1}
  #allocation0 [shape = 'u32[]', space=smem, size = 0x4, offset = 0x4, fixed_abs, tag = 'smem constant byte address 0x4 - core index']
  #allocation1 [shape = 'u32[144,128]{1,0:T(1,128)}', space=vmem, size = 0x12000, scoped, tag = 'internal scratch']
  %s0 = inlined_call_operand.hbm [shape: f32[16,32], index: 0, kind: input, shape index: {}]
  %s1 = inlined_call_operand.vmem [shape: f32[2,8], index: 1, kind: input, shape index: {}]
  %s2 = inlined_call_operand.vmem [shape: f32[2,16], index: 2, kind: input, shape index: {}]
  %s3 = inlined_call_operand.vmem [shape: f32[1,32], index: 3, kind: input, shape index: {}]
  %s4 = inlined_call_operand.hbm [shape: f32[1,32], index: 4, kind: input, shape index: {}]
  %s5 = inlined_call_operand.vmem [shape: bf16[2,32,96], index: 5, kind: input, shape index: {}]
  %s6 = inlined_call_operand.vmem [shape: f32[2,1,96], index: 6, kind: input, shape index: {}]
  %s7 = inlined_call_operand.vmem [shape: bf16[2,32,32], index: 7, kind: input, shape index: {}]
  %s8 = inlined_call_operand.vmem [shape: f32[2,1,32], index: 8, kind: input, shape index: {}]
  %s9 = inlined_call_operand.vmem [shape: f32[2,1,32], index: 9, kind: input, shape index: {}]
  %s10 = inlined_call_operand.vmem [shape: f32[2,1,32], index: 10, kind: input, shape index: {}]
  %s11 = inlined_call_operand.vmem [shape: bf16[2,32,64], index: 11, kind: input, shape index: {}]
  %s12 = inlined_call_operand.vmem [shape: f32[2,1,64], index: 12, kind: input, shape index: {}]
  %s13 = inlined_call_operand.vmem [shape: bf16[2,64,32], index: 13, kind: input, shape index: {}]
  %s14 = inlined_call_operand.vmem [shape: f32[2,1,32], index: 14, kind: input, shape index: {}]
  %s15 = inlined_call_operand.vmem [shape: f32[2,1,32], index: 15, kind: input, shape index: {}]
  %s16 = inlined_call_operand.vmem [shape: f32[2,1,32], index: 16, kind: input, shape index: {}]
  %s17 = inlined_call_operand.hbm [shape: f32[2,32], index: 17, kind: output, shape index: {}]
  %s18 = sld [smem:[#allocation0]]
  $region86: #{tpu_custom_call.1} parent=0
    _
  %s20 = ssub.s32 1, %s18
  %s21 = scalar_select 0, %s20, %s18
  $region1: #{tpu_custom_call.1} parent=0
    #allocation2 [shape = 'u8[8192]{0}', space=vmem, size = 0x2000, scoped, tag = 'input window, operand 0, single buffered']
    #allocation3 [shape = 's32[1]{0}', space=sflag, size = 0x4, scoped, tag = 'scoped memory for tpu_custom_call.1']
    #allocation4 [shape = 's32[1]{0}', space=sflag, size = 0x4, scoped, tag = 'scoped memory for tpu_custom_call.1']
    #allocation5 [shape = 'u8[512]{0}', space=vmem, size = 0x400, scoped, tag = 'input window, operand 4, single buffered']
    #allocation6 [shape = 's32[1]{0}', space=sflag, size = 0x4, scoped, tag = 'scoped memory for tpu_custom_call.1']
    #allocation7 [shape = 'u8[1024]{0}', space=vmem, size = 0x400, scoped, tag = 'output window, operand 0, single buffered']
    %22 = vsyncpa [#allocation3], 0
    %23 = vsyncpa [#allocation6], 0
    %24 = vsyncpa [#allocation4], 0
    // Predicated region
    $region2: #{tpu_custom_call.1} parent=1 // pred_check
      _
    $region3: #{tpu_custom_call.1} parent=1 // pred_check_branch
      %26 = sbr.rel (0) target = $region5
    $region4: #{tpu_custom_call.1} parent=1 // pred_region
      %s28 = ssub.s32 256, 256
      %29 = vsyncadd [#allocation3], %s28
      %s30 = sshll.u32 [#allocation2], 4
      %s31 = int_to_ptr.vmem [resolvable:$true] %s30
      %36 = dma.hbm_to_vmem [thread:$0]  %s0, 256, %s31, [#allocation3], 128, 128, 8
    $region5: #{tpu_custom_call.1} parent=1 // pred_fallthru
      _
    // Predicated region
    $region6: #{tpu_custom_call.1} parent=1 // pred_check
      _
    $region7: #{tpu_custom_call.1} parent=1 // pred_check_branch
      %38 = sbr.rel (0) target = $region9
    $region8: #{tpu_custom_call.1} parent=1 // pred_region
      _
    $region9: #{tpu_custom_call.1} parent=1 // pred_fallthru
      _
    // Predicated region
    $region10: #{tpu_custom_call.1} parent=1 // pred_check
      _
    $region11: #{tpu_custom_call.1} parent=1 // pred_check_branch
      %40 = sbr.rel (0) target = $region13
    $region12: #{tpu_custom_call.1} parent=1 // pred_region
      _
    $region13: #{tpu_custom_call.1} parent=1 // pred_fallthru
      _
    // Predicated region
    $region14: #{tpu_custom_call.1} parent=1 // pred_check
      _
    $region15: #{tpu_custom_call.1} parent=1 // pred_check_branch
      %42 = sbr.rel (0) target = $region17
    $region16: #{tpu_custom_call.1} parent=1 // pred_region
      _
    $region17: #{tpu_custom_call.1} parent=1 // pred_fallthru
      _
    // Predicated region
    $region18: #{tpu_custom_call.1} parent=1 // pred_check
      _
    $region19: #{tpu_custom_call.1} parent=1 // pred_check_branch
      %44 = sbr.rel (0) target = $region21
    $region20: #{tpu_custom_call.1} parent=1 // pred_region
      %s46 = ssub.s32 16, 16
      %47 = vsyncadd [#allocation6], %s46
      %s49 = sshll.u32 [#allocation5], 4
      %s50 = int_to_ptr.vmem [resolvable:$true] %s49
      %52 = dma.hbm_to_vmem [thread:$0]  %s4, 16, %s50, [#allocation6]
    $region21: #{tpu_custom_call.1} parent=1 // pred_fallthru
      _
    // Predicated region
    $region22: #{tpu_custom_call.1} parent=1 // pred_check
      _
    $region23: #{tpu_custom_call.1} parent=1 // pred_check_branch
      %54 = sbr.rel (0) target = $region25
    $region24: #{tpu_custom_call.1} parent=1 // pred_region
      _
    $region25: #{tpu_custom_call.1} parent=1 // pred_fallthru
      _
    // Predicated region
    $region26: #{tpu_custom_call.1} parent=1 // pred_check
      _
    $region27: #{tpu_custom_call.1} parent=1 // pred_check_branch
      %56 = sbr.rel (0) target = $region29
    $region28: #{tpu_custom_call.1} parent=1 // pred_region
      _
    $region29: #{tpu_custom_call.1} parent=1 // pred_fallthru
      _
    // Predicated region
    $region30: #{tpu_custom_call.1} parent=1 // pred_check
      _
    $region31: #{tpu_custom_call.1} parent=1 // pred_check_branch
      %58 = sbr.rel (0) target = $region33
    $region32: #{tpu_custom_call.1} parent=1 // pred_region
      _
    $region33: #{tpu_custom_call.1} parent=1 // pred_fallthru
      _
    // Predicated region
    $region34: #{tpu_custom_call.1} parent=1 // pred_check
      _
    $region35: #{tpu_custom_call.1} parent=1 // pred_check_branch
      %60 = sbr.rel (0) target = $region37
    $region36: #{tpu_custom_call.1} parent=1 // pred_region
      _
    $region37: #{tpu_custom_call.1} parent=1 // pred_fallthru
      _
    // Predicated region
    $region38: #{tpu_custom_call.1} parent=1 // pred_check
      _
    $region39: #{tpu_custom_call.1} parent=1 // pred_check_branch
      %62 = sbr.rel (0) target = $region41
    $region40: #{tpu_custom_call.1} parent=1 // pred_region
      _
    $region41: #{tpu_custom_call.1} parent=1 // pred_fallthru
      _
    // Predicated region
    $region42: #{tpu_custom_call.1} parent=1 // pred_check
      _
    $region43: #{tpu_custom_call.1} parent=1 // pred_check_branch
      %64 = sbr.rel (0) target = $region45
    $region44: #{tpu_custom_call.1} parent=1 // pred_region
      _
    $region45: #{tpu_custom_call.1} parent=1 // pred_fallthru
      _
    // Predicated region
    $region46: #{tpu_custom_call.1} parent=1 // pred_check
      _
    $region47: #{tpu_custom_call.1} parent=1 // pred_check_branch
      %66 = sbr.rel (0) target = $region49
    $region48: #{tpu_custom_call.1} parent=1 // pred_region
      _
    $region49: #{tpu_custom_call.1} parent=1 // pred_fallthru
      _
    // Predicated region
    $region50: #{tpu_custom_call.1} parent=1 // pred_check
      _
    $region51: #{tpu_custom_call.1} parent=1 // pred_check_branch
      %68 = sbr.rel (0) target = $region53
    $region52: #{tpu_custom_call.1} parent=1 // pred_region
      _
    $region53: #{tpu_custom_call.1} parent=1 // pred_fallthru
      _
    // Predicated region
    $region54: #{tpu_custom_call.1} parent=1 // pred_check
      _
    $region55: #{tpu_custom_call.1} parent=1 // pred_check_branch
      %70 = sbr.rel (0) target = $region57
    $region56: #{tpu_custom_call.1} parent=1 // pred_region
      _
    $region57: #{tpu_custom_call.1} parent=1 // pred_fallthru
      _
    // Predicated region
    $region58: #{tpu_custom_call.1} parent=1 // pred_check
      _
    $region59: #{tpu_custom_call.1} parent=1 // pred_check_branch
      %72 = sbr.rel (0) target = $region61
    $region60: #{tpu_custom_call.1} parent=1 // pred_region
      _
    $region61: #{tpu_custom_call.1} parent=1 // pred_fallthru
      _
    // Predicated region
    $region62: #{tpu_custom_call.1} parent=1 // pred_check
      _
    $region63: #{tpu_custom_call.1} parent=1 // pred_check_branch
      %74 = sbr.rel (0) target = $region65
    $region64: #{tpu_custom_call.1} parent=1 // pred_region
      _
    $region65: #{tpu_custom_call.1} parent=1 // pred_fallthru
      _
    // Predicated region
    $region66: #{tpu_custom_call.1} parent=1 // pred_check
      _
    $region67: #{tpu_custom_call.1} parent=1 // pred_check_branch
      %76 = sbr.rel (0) target = $region69
    $region68: #{tpu_custom_call.1} parent=1 // pred_region
      _
    $region69: #{tpu_custom_call.1} parent=1 // pred_fallthru
      _
    // Predicated region
    $region70: #{tpu_custom_call.1} parent=1 // pred_check
      _
    $region71: #{tpu_custom_call.1} parent=1 // pred_check_branch
      %78 = sbr.rel (0) target = $region73
    $region72: #{tpu_custom_call.1} parent=1 // pred_region
      %79 = dma.done [#allocation3], 256
    $region73: #{tpu_custom_call.1} parent=1 // pred_fallthru
      _
    // Predicated region
    $region74: #{tpu_custom_call.1} parent=1 // pred_check
      _
    $region75: #{tpu_custom_call.1} parent=1 // pred_check_branch
      %81 = sbr.rel (0) target = $region77
    $region76: #{tpu_custom_call.1} parent=1 // pred_region
      %82 = dma.done [#allocation6], 16
    $region77: #{tpu_custom_call.1} parent=1 // pred_fallthru
      _
    %v84 = vld [vmem:[#allocation2] sm:$0xff]
    %v85 = vld [vmem:[#allocation2 + $0x8] sm:$0xff]
    %v86 = vld [vmem:[%s3] sm:$0x1]
    %v87 = vld [vmem:[#allocation5] sm:$0x1]
    %vm88 = vcmask 261120
    %v89 = vsel %vm88, %v84, 0.0
    %90 = vadd.xlane.f32.xlu0 %v89
    %v91 = vpop.xlane.xlu0 %90
    %v92 = vsel %vm88, %v85, 0.0
    %93 = vadd.xlane.f32.xlu0 %v92
    %v94 = vpop.xlane.xlu0 %93
    %v95 = vrcp.pop 32.0
    %v96 = vmul.f32 %v91, %v95
    %v97 = vmul.f32 %v94, %v95
    %v98 = vsub.f32 %v84, %v96
    %v99 = vsub.f32 %v85, %v97
    %v100 = vmul.f32 %v98, %v98
    %v101 = vmul.f32 %v99, %v99
    %v102 = vsel %vm88, %v100, 0.0
    %103 = vadd.xlane.f32.xlu0 %v102
    %v104 = vpop.xlane.xlu0 %103
    %v105 = vsel %vm88, %v101, 0.0
    %106 = vadd.xlane.f32.xlu0 %v105
    %v107 = vpop.xlane.xlu0 %106
    %v108 = vmul.f32 %v104, %v95
    %v109 = vmul.f32 %v107, %v95
    %v110 = vadd.f32 %v108, 1e-12
    %v111 = vadd.f32 %v109, 1e-12
    %v112 = vrsqrt.pop %v110
    %v113 = vrsqrt.pop %v111
    %v114 = vmul.f32 %v98, %v112
    %v115 = vmul.f32 %v99, %v113
    %v117 = vlaneseq
    %v118 = vshrl.u32 %v117, 7
    %v119 = vsub.s32 0, %v118
    %v120 = vrot.slane %v86, %v119
    %v122 = vmul.f32 %v114, %v120
    %v123 = vmul.f32 %v115, %v120
    %v125 = vlaneseq
    %v126 = vshrl.u32 %v125, 7
    %v127 = vsub.s32 0, %v126
    %v128 = vrot.slane %v87, %v127
    %v130 = vadd.f32 %v122, %v128
    %v131 = vadd.f32 %v123, %v128
    %v132 = vld [vmem:[%s1] sm:$0x3]
    %v135 = vunpack.c.l.s4 1966171168
    %v136 = vunpack.c.0.s8 %v135
    %v137 = vlaneseq
    %v138 = vshrl.u32 %v137, 7
    %v139 = vsub.s32 %v136, %v138
    %v140 = vrot.slane %v132, %v139
    %v141 = vcombine.high %v140, %v140
    %v143 = vunpack.c.l.s4 1966171168
    %v144 = vunpack.c.0.s8 %v143
    %v145 = vlaneseq
    %v146 = vshrl.u32 %v145, 7
    %v147 = vsub.s32 %v144, %v146
    %v148 = vrot.slane %v140, %v147
    %v150 = vunpack.c.l.s4 1966171168
    %v151 = vunpack.c.0.s8 %v150
    %v152 = vlaneseq
    %v153 = vshrl.u32 %v152, 7
    %v154 = vsub.s32 %v151, %v153
    %v155 = vrot.slane %v141, %v154
    %v156 = vlaneseq
    %v157 = vshrl.u32 %v156, 7
    %v158 = vsub.s32 0, %v157
    %v159 = vrot.slane %v148, %v158
    %v160 = vlaneseq
    %v161 = vshrl.u32 %v160, 7
    %v162 = vsub.s32 0, %v161
    %v163 = vrot.slane %v155, %v162
    %v166 = vld [vmem:[%s5] sm:$0xf]
    %v167 = vld [vmem:[%s5 + $0x4] sm:$0xf]
    %v168 = vld [vmem:[%s5 + $0x8] sm:$0xf]
    %v169 = vld [vmem:[%s5 + $0xc] sm:$0xf]
    %v170 = vpack.c.bf16 %v131, %v130
    %v171 = vld [vmem:[%s6] sm:$0x1]
    %v173 = vlaneseq
    %v174 = vshrl.u32 %v173, 7
    %v175 = vsub.s32 0, %v174
    %v176 = vrot.slane %v171, %v175
    %v182 = vunpack.c.l.b16 %v166
    %v183 = vunpack.c.l.b16 %v167
    %v184 = vunpack.c.l.b16 %v168
    %v185 = vunpack.c.l.b16 %v169
    %v186 = vpack.c.b16 %v183, %v182
    %v187 = vpack.c.b16 %v185, %v184
    %v191 = vsel %vm88, %v170, 0
    %193 = vmatprep.subr.bf16.mxu0 0
    %194 = vmatpush1.bf16.msra.mxu0 %v186
    %195 = vmatprep.subr.bf16.mxu0 0
    %196 = vmatpush1.bf16.msra.mxu0 %v187
    %197 = vmatprep.subr.bf16.mxu0 0
    %198 = vmatpush1.bf16.msra.mxu0 0
    %199 = vmatprep.subr.bf16.mxu0 0
    %200 = vmatpush1.bf16.msra.mxu0 0
    %201 = vmatprep.subr.bf16.mxu0 0
    %202 = vmatpush1.bf16.msra.mxu0 0
    %203 = vmatprep.subr.bf16.mxu0 0
    %204 = vmatpush1.bf16.msra.mxu0 0
    %205 = vmatprep.subr.bf16.mxu0 0
    %206 = vmatpush1.bf16.msra.mxu0 0
    %207 = vmatprep.subr.bf16.mxu0 0
    %208 = vmatpush1.bf16.msra.mxu0 0
    %209 = vmatprep.subr.bf16.mxu0 0
    %210 = vmatpush1.bf16.msra.mxu0 0
    %211 = vmatprep.subr.bf16.mxu0 0
    %212 = vmatpush1.bf16.msra.mxu0 0
    %213 = vmatprep.subr.bf16.mxu0 0
    %214 = vmatpush1.bf16.msra.mxu0 0
    %215 = vmatprep.subr.bf16.mxu0 0
    %216 = vmatpush1.bf16.msra.mxu0 0
    %217 = vmatprep.subr.bf16.mxu0 0
    %218 = vmatpush1.bf16.msra.mxu0 0
    %219 = vmatprep.subr.bf16.mxu0 0
    %220 = vmatpush1.bf16.msra.mxu0 0
    %221 = vmatprep.subr.bf16.mxu0 0
    %222 = vmatpush1.bf16.msra.mxu0 0
    %223 = vmatprep.subr.bf16.mxu0 0
    %224 = vmatpush1.bf16.msra.mxu0 0
    %225 = vmatprep.mubr.bf16.mxu0 0
    %226 = vmatmul.mubr.bf16.gmra.mrb[0].mxu0 %v191
    %v227 = vpop.f32.mrb[0].mxu0
    %v228 = vadd.f32 %v176, %v227
    %v229 = vpop.f32.mrb[0].mxu0
    %v230 = vpop.f32.mrb[0].mxu0
    %v231 = vadd.f32 %v176, %v230
    %v232 = vpop.f32.mrb[0].mxu0
    %233 = vdwg.mxu0
    %v234 = vpack.c.bf16 %v228, %v228
    %v235 = vpack.c.bf16 %v231, %v231
    %237 = vrot.lane.b32.xlu0 %v234, 96
    %v238 = vpop.permute.xlu0 %237
    %vm239 = vcmask 130048
    %v241 = vsel %vm239, %v234, 0
    %v244 = vsel %vm239, %v238, 0
    %246 = vmatprep.subr.bf16.mxu0 0
    %247 = vmatpush1.bf16.xpose.msra.mxu0 %v244
    %248 = vmatprep.subr.bf16.mxu0 0
    %249 = vmatpush1.bf16.xpose.msra.mxu0 0
    %250 = vmatprep.subr.bf16.mxu0 0
    %251 = vmatpush1.bf16.xpose.msra.mxu0 0
    %252 = vmatprep.subr.bf16.mxu0 0
    %253 = vmatpush1.bf16.xpose.msra.mxu0 0
    %254 = vmatprep.subr.bf16.mxu0 0
    %255 = vmatpush1.bf16.xpose.msra.mxu0 0
    %256 = vmatprep.subr.bf16.mxu0 0
    %257 = vmatpush1.bf16.xpose.msra.mxu0 0
    %258 = vmatprep.subr.bf16.mxu0 0
    %259 = vmatpush1.bf16.xpose.msra.mxu0 0
    %260 = vmatprep.subr.bf16.mxu0 0
    %261 = vmatpush1.bf16.xpose.msra.mxu0 0
    %262 = vmatprep.subr.bf16.mxu0 0
    %263 = vmatpush1.bf16.xpose.msra.mxu0 0
    %264 = vmatprep.subr.bf16.mxu0 0
    %265 = vmatpush1.bf16.xpose.msra.mxu0 0
    %266 = vmatprep.subr.bf16.mxu0 0
    %267 = vmatpush1.bf16.xpose.msra.mxu0 0
    %268 = vmatprep.subr.bf16.mxu0 0
    %269 = vmatpush1.bf16.xpose.msra.mxu0 0
    %270 = vmatprep.subr.bf16.mxu0 0
    %271 = vmatpush1.bf16.xpose.msra.mxu0 0
    %272 = vmatprep.subr.bf16.mxu0 0
    %273 = vmatpush1.bf16.xpose.msra.mxu0 0
    %274 = vmatprep.subr.bf16.mxu0 0
    %275 = vmatpush1.bf16.xpose.msra.mxu0 0
    %276 = vmatprep.subr.bf16.mxu0 0
    %277 = vmatpush1.bf16.xpose.msra.mxu0 0
    %278 = vmatprep.mubr.bf16.mxu0 0
    %279 = vmatmul.mubr.bf16.gmra.mrb[0].mxu0 %v241
    %v280 = vpop.f32.mrb[0].mxu0
    %v281 = vadd.f32 0.0, %v280
    %v282 = vpop.f32.mrb[0].mxu0
    %v283 = vpop.f32.mrb[0].mxu0
    %v284 = vpop.f32.mrb[0].mxu0
    %285 = vdwg.mxu0
    %287 = vrot.lane.b32.xlu0 %v235, 96
    %v288 = vpop.permute.xlu0 %287
    %v290 = vsel %vm239, %v235, 0
    %v293 = vsel %vm239, %v288, 0
    %295 = vmatprep.subr.bf16.mxu0 0
    %296 = vmatpush1.bf16.xpose.msra.mxu0 %v293
    %297 = vmatprep.subr.bf16.mxu0 0
    %298 = vmatpush1.bf16.xpose.msra.mxu0 0
    %299 = vmatprep.subr.bf16.mxu0 0
    %300 = vmatpush1.bf16.xpose.msra.mxu0 0
    %301 = vmatprep.subr.bf16.mxu0 0
    %302 = vmatpush1.bf16.xpose.msra.mxu0 0
    %303 = vmatprep.subr.bf16.mxu0 0
    %304 = vmatpush1.bf16.xpose.msra.mxu0 0
    %305 = vmatprep.subr.bf16.mxu0 0
    %306 = vmatpush1.bf16.xpose.msra.mxu0 0
    %307 = vmatprep.subr.bf16.mxu0 0
    %308 = vmatpush1.bf16.xpose.msra.mxu0 0
    %309 = vmatprep.subr.bf16.mxu0 0
    %310 = vmatpush1.bf16.xpose.msra.mxu0 0
    %311 = vmatprep.subr.bf16.mxu0 0
    %312 = vmatpush1.bf16.xpose.msra.mxu0 0
    %313 = vmatprep.subr.bf16.mxu0 0
    %314 = vmatpush1.bf16.xpose.msra.mxu0 0
    %315 = vmatprep.subr.bf16.mxu0 0
    %316 = vmatpush1.bf16.xpose.msra.mxu0 0
    %317 = vmatprep.subr.bf16.mxu0 0
    %318 = vmatpush1.bf16.xpose.msra.mxu0 0
    %319 = vmatprep.subr.bf16.mxu0 0
    %320 = vmatpush1.bf16.xpose.msra.mxu0 0
    %321 = vmatprep.subr.bf16.mxu0 0
    %322 = vmatpush1.bf16.xpose.msra.mxu0 0
    %323 = vmatprep.subr.bf16.mxu0 0
    %324 = vmatpush1.bf16.xpose.msra.mxu0 0
    %325 = vmatprep.subr.bf16.mxu0 0
    %326 = vmatpush1.bf16.xpose.msra.mxu0 0
    %327 = vmatprep.mubr.bf16.mxu0 0
    %328 = vmatmul.mubr.bf16.gmra.mrb[0].mxu0 %v290
    %v329 = vpop.f32.mrb[0].mxu0
    %v330 = vadd.f32 0.0, %v329
    %v331 = vpop.f32.mrb[0].mxu0
    %v332 = vpop.f32.mrb[0].mxu0
    %v333 = vpop.f32.mrb[0].mxu0
    %334 = vdwg.mxu0
    %v335 = vmul.f32 %v281, 0.25
    %v336 = vmul.f32 %v330, 0.25
    %v337 = vadd.f32 %v335, %v159
    %v338 = vadd.f32 %v336, %v163
    %vm339 = vcmask 64512
    %v340 = vsel %vm339, %v337, -inf
    %341 = vmax.xlane.f32.xlu0 %v340
    %v342 = vpop.xlane.xlu0 %341
    %v343 = vsel %vm339, %v338, -inf
    %344 = vmax.xlane.f32.xlu0 %v343
    %v345 = vpop.xlane.xlu0 %344
    %v346 = vsub.f32 %v337, %v342
    %v347 = vsub.f32 %v338, %v345
    %v348 = vmul.f32 %v346, 1.442695
    %v349 = vpow.pop %v348
    %v350 = vmul.f32 %v347, 1.442695
    %v351 = vpow.pop %v350
    %v352 = vsel %vm339, %v349, 0.0
    %353 = vadd.xlane.f32.xlu0 %v352
    %v354 = vpop.xlane.xlu0 %353
    %v355 = vsel %vm339, %v351, 0.0
    %356 = vadd.xlane.f32.xlu0 %v355
    %v357 = vpop.xlane.xlu0 %356
    %v358 = vrcp.pop %v354
    %v359 = vrcp.pop %v357
    %v360 = vmul.f32 %v349, %v358
    %v361 = vmul.f32 %v351, %v359
    %v362 = vpack.c.bf16 %v360, %v360
    %v363 = vpack.c.bf16 %v361, %v361
    %364 = vrot.lane.b32.xlu0 %v234, 64
    %v365 = vpop.permute.xlu0 %364
    %v367 = vsel %vm339, %v362, 0
    %vm369 = vcmask 1043456
    %v371 = vsel %vm369, %v365, 0
    %373 = vmatprep.subr.bf16.mxu0 0
    %374 = vmatpush1.bf16.msra.mxu0 %v371
    %375 = vmatprep.subr.bf16.mxu0 0
    %376 = vmatpush1.bf16.msra.mxu0 0
    %377 = vmatprep.subr.bf16.mxu0 0
    %378 = vmatpush1.bf16.msra.mxu0 0
    %379 = vmatprep.subr.bf16.mxu0 0
    %380 = vmatpush1.bf16.msra.mxu0 0
    %381 = vmatprep.subr.bf16.mxu0 0
    %382 = vmatpush1.bf16.msra.mxu0 0
    %383 = vmatprep.subr.bf16.mxu0 0
    %384 = vmatpush1.bf16.msra.mxu0 0
    %385 = vmatprep.subr.bf16.mxu0 0
    %386 = vmatpush1.bf16.msra.mxu0 0
    %387 = vmatprep.subr.bf16.mxu0 0
    %388 = vmatpush1.bf16.msra.mxu0 0
    %389 = vmatprep.subr.bf16.mxu0 0
    %390 = vmatpush1.bf16.msra.mxu0 0
    %391 = vmatprep.subr.bf16.mxu0 0
    %392 = vmatpush1.bf16.msra.mxu0 0
    %393 = vmatprep.subr.bf16.mxu0 0
    %394 = vmatpush1.bf16.msra.mxu0 0
    %395 = vmatprep.subr.bf16.mxu0 0
    %396 = vmatpush1.bf16.msra.mxu0 0
    %397 = vmatprep.subr.bf16.mxu0 0
    %398 = vmatpush1.bf16.msra.mxu0 0
    %399 = vmatprep.subr.bf16.mxu0 0
    %400 = vmatpush1.bf16.msra.mxu0 0
    %401 = vmatprep.subr.bf16.mxu0 0
    %402 = vmatpush1.bf16.msra.mxu0 0
    %403 = vmatprep.subr.bf16.mxu0 0
    %404 = vmatpush1.bf16.msra.mxu0 0
    %405 = vmatprep.mubr.bf16.mxu0 0
    %406 = vmatmul.mubr.bf16.gmra.mrb[0].mxu0 %v367
    %v407 = vpop.f32.mrb[0].mxu0
    %v408 = vadd.f32 0.0, %v407
    %v409 = vpop.f32.mrb[0].mxu0
    %v410 = vpop.f32.mrb[0].mxu0
    %v411 = vpop.f32.mrb[0].mxu0
    %412 = vdwg.mxu0
    %413 = vrot.lane.b32.xlu0 %v235, 64
    %v414 = vpop.permute.xlu0 %413
    %v416 = vsel %vm339, %v363, 0
    %v419 = vsel %vm369, %v414, 0
    %421 = vmatprep.subr.bf16.mxu0 0
    %422 = vmatpush1.bf16.msra.mxu0 %v419
    %423 = vmatprep.subr.bf16.mxu0 0
    %424 = vmatpush1.bf16.msra.mxu0 0
    %425 = vmatprep.subr.bf16.mxu0 0
    %426 = vmatpush1.bf16.msra.mxu0 0
    %427 = vmatprep.subr.bf16.mxu0 0
    %428 = vmatpush1.bf16.msra.mxu0 0
    %429 = vmatprep.subr.bf16.mxu0 0
    %430 = vmatpush1.bf16.msra.mxu0 0
    %431 = vmatprep.subr.bf16.mxu0 0
    %432 = vmatpush1.bf16.msra.mxu0 0
    %433 = vmatprep.subr.bf16.mxu0 0
    %434 = vmatpush1.bf16.msra.mxu0 0
    %435 = vmatprep.subr.bf16.mxu0 0
    %436 = vmatpush1.bf16.msra.mxu0 0
    %437 = vmatprep.subr.bf16.mxu0 0
    %438 = vmatpush1.bf16.msra.mxu0 0
    %439 = vmatprep.subr.bf16.mxu0 0
    %440 = vmatpush1.bf16.msra.mxu0 0
    %441 = vmatprep.subr.bf16.mxu0 0
    %442 = vmatpush1.bf16.msra.mxu0 0
    %443 = vmatprep.subr.bf16.mxu0 0
    %444 = vmatpush1.bf16.msra.mxu0 0
    %445 = vmatprep.subr.bf16.mxu0 0
    %446 = vmatpush1.bf16.msra.mxu0 0
    %447 = vmatprep.subr.bf16.mxu0 0
    %448 = vmatpush1.bf16.msra.mxu0 0
    %449 = vmatprep.subr.bf16.mxu0 0
    %450 = vmatpush1.bf16.msra.mxu0 0
    %451 = vmatprep.subr.bf16.mxu0 0
    %452 = vmatpush1.bf16.msra.mxu0 0
    %453 = vmatprep.mubr.bf16.mxu0 0
    %454 = vmatmul.mubr.bf16.gmra.mrb[0].mxu0 %v416
    %v455 = vpop.f32.mrb[0].mxu0
    %v456 = vadd.f32 0.0, %v455
    %v457 = vpop.f32.mrb[0].mxu0
    %v458 = vpop.f32.mrb[0].mxu0
    %v459 = vpop.f32.mrb[0].mxu0
    %460 = vdwg.mxu0
    %461 = vrot.lane.b32.xlu0 %v234, 112
    %v462 = vpop.permute.xlu0 %461
    %463 = vrot.lane.b32.xlu0 %v234, 80
    %v464 = vpop.permute.xlu0 %463
    %v466 = vsel %vm239, %v462, 0
    %v469 = vsel %vm239, %v464, 0
    %471 = vmatprep.subr.bf16.mxu0 0
    %472 = vmatpush1.bf16.xpose.msra.mxu0 %v469
    %473 = vmatprep.subr.bf16.mxu0 0
    %474 = vmatpush1.bf16.xpose.msra.mxu0 0
    %475 = vmatprep.subr.bf16.mxu0 0
    %476 = vmatpush1.bf16.xpose.msra.mxu0 0
    %477 = vmatprep.subr.bf16.mxu0 0
    %478 = vmatpush1.bf16.xpose.msra.mxu0 0
    %479 = vmatprep.subr.bf16.mxu0 0
    %480 = vmatpush1.bf16.xpose.msra.mxu0 0
    %481 = vmatprep.subr.bf16.mxu0 0
    %482 = vmatpush1.bf16.xpose.msra.mxu0 0
    %483 = vmatprep.subr.bf16.mxu0 0
    %484 = vmatpush1.bf16.xpose.msra.mxu0 0
    %485 = vmatprep.subr.bf16.mxu0 0
    %486 = vmatpush1.bf16.xpose.msra.mxu0 0
    %487 = vmatprep.subr.bf16.mxu0 0
    %488 = vmatpush1.bf16.xpose.msra.mxu0 0
    %489 = vmatprep.subr.bf16.mxu0 0
    %490 = vmatpush1.bf16.xpose.msra.mxu0 0
    %491 = vmatprep.subr.bf16.mxu0 0
    %492 = vmatpush1.bf16.xpose.msra.mxu0 0
    %493 = vmatprep.subr.bf16.mxu0 0
    %494 = vmatpush1.bf16.xpose.msra.mxu0 0
    %495 = vmatprep.subr.bf16.mxu0 0
    %496 = vmatpush1.bf16.xpose.msra.mxu0 0
    %497 = vmatprep.subr.bf16.mxu0 0
    %498 = vmatpush1.bf16.xpose.msra.mxu0 0
    %499 = vmatprep.subr.bf16.mxu0 0
    %500 = vmatpush1.bf16.xpose.msra.mxu0 0
    %501 = vmatprep.subr.bf16.mxu0 0
    %502 = vmatpush1.bf16.xpose.msra.mxu0 0
    %503 = vmatprep.mubr.bf16.mxu0 0
    %504 = vmatmul.mubr.bf16.gmra.mrb[0].mxu0 %v466
    %v505 = vpop.f32.mrb[0].mxu0
    %v506 = vadd.f32 0.0, %v505
    %v507 = vpop.f32.mrb[0].mxu0
    %v508 = vpop.f32.mrb[0].mxu0
    %v509 = vpop.f32.mrb[0].mxu0
    %510 = vdwg.mxu0
    %511 = vrot.lane.b32.xlu0 %v235, 112
    %v512 = vpop.permute.xlu0 %511
    %513 = vrot.lane.b32.xlu0 %v235, 80
    %v514 = vpop.permute.xlu0 %513
    %v516 = vsel %vm239, %v512, 0
    %v519 = vsel %vm239, %v514, 0
    %521 = vmatprep.subr.bf16.mxu0 0
    %522 = vmatpush1.bf16.xpose.msra.mxu0 %v519
    %523 = vmatprep.subr.bf16.mxu0 0
    %524 = vmatpush1.bf16.xpose.msra.mxu0 0
    %525 = vmatprep.subr.bf16.mxu0 0
    %526 = vmatpush1.bf16.xpose.msra.mxu0 0
    %527 = vmatprep.subr.bf16.mxu0 0
    %528 = vmatpush1.bf16.xpose.msra.mxu0 0
    %529 = vmatprep.subr.bf16.mxu0 0
    %530 = vmatpush1.bf16.xpose.msra.mxu0 0
    %531 = vmatprep.subr.bf16.mxu0 0
    %532 = vmatpush1.bf16.xpose.msra.mxu0 0
    %533 = vmatprep.subr.bf16.mxu0 0
    %534 = vmatpush1.bf16.xpose.msra.mxu0 0
    %535 = vmatprep.subr.bf16.mxu0 0
    %536 = vmatpush1.bf16.xpose.msra.mxu0 0
    %537 = vmatprep.subr.bf16.mxu0 0
    %538 = vmatpush1.bf16.xpose.msra.mxu0 0
    %539 = vmatprep.subr.bf16.mxu0 0
    %540 = vmatpush1.bf16.xpose.msra.mxu0 0
    %541 = vmatprep.subr.bf16.mxu0 0
    %542 = vmatpush1.bf16.xpose.msra.mxu0 0
    %543 = vmatprep.subr.bf16.mxu0 0
    %544 = vmatpush1.bf16.xpose.msra.mxu0 0
    %545 = vmatprep.subr.bf16.mxu0 0
    %546 = vmatpush1.bf16.xpose.msra.mxu0 0
    %547 = vmatprep.subr.bf16.mxu0 0
    %548 = vmatpush1.bf16.xpose.msra.mxu0 0
    %549 = vmatprep.subr.bf16.mxu0 0
    %550 = vmatpush1.bf16.xpose.msra.mxu0 0
    %551 = vmatprep.subr.bf16.mxu0 0
    %552 = vmatpush1.bf16.xpose.msra.mxu0 0
    %553 = vmatprep.mubr.bf16.mxu0 0
    %554 = vmatmul.mubr.bf16.gmra.mrb[0].mxu0 %v516
    %v555 = vpop.f32.mrb[0].mxu0
    %v556 = vadd.f32 0.0, %v555
    %v557 = vpop.f32.mrb[0].mxu0
    %v558 = vpop.f32.mrb[0].mxu0
    %v559 = vpop.f32.mrb[0].mxu0
    %560 = vdwg.mxu0
    %v561 = vmul.f32 %v506, 0.25
    %v562 = vmul.f32 %v556, 0.25
    %v563 = vadd.f32 %v561, %v159
    %v564 = vadd.f32 %v562, %v163
    %v565 = vsel %vm339, %v563, -inf
    %566 = vmax.xlane.f32.xlu0 %v565
    %v567 = vpop.xlane.xlu0 %566
    %v568 = vsel %vm339, %v564, -inf
    %569 = vmax.xlane.f32.xlu0 %v568
    %v570 = vpop.xlane.xlu0 %569
    %v571 = vsub.f32 %v563, %v567
    %v572 = vsub.f32 %v564, %v570
    %v573 = vmul.f32 %v571, 1.442695
    %v574 = vpow.pop %v573
    %v575 = vmul.f32 %v572, 1.442695
    %v576 = vpow.pop %v575
    %v577 = vsel %vm339, %v574, 0.0
    %578 = vadd.xlane.f32.xlu0 %v577
    %v579 = vpop.xlane.xlu0 %578
    %v580 = vsel %vm339, %v576, 0.0
    %581 = vadd.xlane.f32.xlu0 %v580
    %v582 = vpop.xlane.xlu0 %581
    %v583 = vrcp.pop %v579
    %v584 = vrcp.pop %v582
    %v585 = vmul.f32 %v574, %v583
    %v586 = vmul.f32 %v576, %v584
    %v587 = vpack.c.bf16 %v585, %v585
    %v588 = vpack.c.bf16 %v586, %v586
    %589 = vrot.lane.b32.xlu0 %v234, 48
    %v590 = vpop.permute.xlu0 %589
    %v592 = vsel %vm339, %v587, 0
    %v595 = vsel %vm369, %v590, 0
    %597 = vmatprep.subr.bf16.mxu0 0
    %598 = vmatpush1.bf16.msra.mxu0 %v595
    %599 = vmatprep.subr.bf16.mxu0 0
    %600 = vmatpush1.bf16.msra.mxu0 0
    %601 = vmatprep.subr.bf16.mxu0 0
    %602 = vmatpush1.bf16.msra.mxu0 0
    %603 = vmatprep.subr.bf16.mxu0 0
    %604 = vmatpush1.bf16.msra.mxu0 0
    %605 = vmatprep.subr.bf16.mxu0 0
    %606 = vmatpush1.bf16.msra.mxu0 0
    %607 = vmatprep.subr.bf16.mxu0 0
    %608 = vmatpush1.bf16.msra.mxu0 0
    %609 = vmatprep.subr.bf16.mxu0 0
    %610 = vmatpush1.bf16.msra.mxu0 0
    %611 = vmatprep.subr.bf16.mxu0 0
    %612 = vmatpush1.bf16.msra.mxu0 0
    %613 = vmatprep.subr.bf16.mxu0 0
    %614 = vmatpush1.bf16.msra.mxu0 0
    %615 = vmatprep.subr.bf16.mxu0 0
    %616 = vmatpush1.bf16.msra.mxu0 0
    %617 = vmatprep.subr.bf16.mxu0 0
    %618 = vmatpush1.bf16.msra.mxu0 0
    %619 = vmatprep.subr.bf16.mxu0 0
    %620 = vmatpush1.bf16.msra.mxu0 0
    %621 = vmatprep.subr.bf16.mxu0 0
    %622 = vmatpush1.bf16.msra.mxu0 0
    %623 = vmatprep.subr.bf16.mxu0 0
    %624 = vmatpush1.bf16.msra.mxu0 0
    %625 = vmatprep.subr.bf16.mxu0 0
    %626 = vmatpush1.bf16.msra.mxu0 0
    %627 = vmatprep.subr.bf16.mxu0 0
    %628 = vmatpush1.bf16.msra.mxu0 0
    %629 = vmatprep.mubr.bf16.mxu0 0
    %630 = vmatmul.mubr.bf16.gmra.mrb[0].mxu0 %v592
    %v631 = vpop.f32.mrb[0].mxu0
    %v632 = vadd.f32 0.0, %v631
    %v633 = vpop.f32.mrb[0].mxu0
    %v634 = vpop.f32.mrb[0].mxu0
    %v635 = vpop.f32.mrb[0].mxu0
    %636 = vdwg.mxu0
    %637 = vrot.lane.b32.xlu0 %v235, 48
    %v638 = vpop.permute.xlu0 %637
    %v640 = vsel %vm339, %v588, 0
    %v643 = vsel %vm369, %v638, 0
    %645 = vmatprep.subr.bf16.mxu0 0
    %646 = vmatpush1.bf16.msra.mxu0 %v643
    %647 = vmatprep.subr.bf16.mxu0 0
    %648 = vmatpush1.bf16.msra.mxu0 0
    %649 = vmatprep.subr.bf16.mxu0 0
    %650 = vmatpush1.bf16.msra.mxu0 0
    %651 = vmatprep.subr.bf16.mxu0 0
    %652 = vmatpush1.bf16.msra.mxu0 0
    %653 = vmatprep.subr.bf16.mxu0 0
    %654 = vmatpush1.bf16.msra.mxu0 0
    %655 = vmatprep.subr.bf16.mxu0 0
    %656 = vmatpush1.bf16.msra.mxu0 0
    %657 = vmatprep.subr.bf16.mxu0 0
    %658 = vmatpush1.bf16.msra.mxu0 0
    %659 = vmatprep.subr.bf16.mxu0 0
    %660 = vmatpush1.bf16.msra.mxu0 0
    %661 = vmatprep.subr.bf16.mxu0 0
    %662 = vmatpush1.bf16.msra.mxu0 0
    %663 = vmatprep.subr.bf16.mxu0 0
    %664 = vmatpush1.bf16.msra.mxu0 0
    %665 = vmatprep.subr.bf16.mxu0 0
    %666 = vmatpush1.bf16.msra.mxu0 0
    %667 = vmatprep.subr.bf16.mxu0 0
    %668 = vmatpush1.bf16.msra.mxu0 0
    %669 = vmatprep.subr.bf16.mxu0 0
    %670 = vmatpush1.bf16.msra.mxu0 0
    %671 = vmatprep.subr.bf16.mxu0 0
    %672 = vmatpush1.bf16.msra.mxu0 0
    %673 = vmatprep.subr.bf16.mxu0 0
    %674 = vmatpush1.bf16.msra.mxu0 0
    %675 = vmatprep.subr.bf16.mxu0 0
    %676 = vmatpush1.bf16.msra.mxu0 0
    %677 = vmatprep.mubr.bf16.mxu0 0
    %678 = vmatmul.mubr.bf16.gmra.mrb[0].mxu0 %v640
    %v679 = vpop.f32.mrb[0].mxu0
    %v680 = vadd.f32 0.0, %v679
    %v681 = vpop.f32.mrb[0].mxu0
    %v682 = vpop.f32.mrb[0].mxu0
    %v683 = vpop.f32.mrb[0].mxu0
    %684 = vdwg.mxu0
    %687 = vrot.lane.b32.xlu0 %v632, 16
    %v688 = vpop.permute.xlu0 %687
    %689 = vrot.lane.b32.xlu0 %v680, 16
    %v690 = vpop.permute.xlu0 %689
    %v693 = vsel %vm239, %v408, %v688
    %v694 = vsel %vm239, %v456, %v690
    %v695 = vld [vmem:[%s7] sm:$0xf]
    %v696 = vld [vmem:[%s7 + $0x4] sm:$0xf]
    %v697 = vld [vmem:[%s7 + $0x8] sm:$0xf]
    %v698 = vld [vmem:[%s7 + $0xc] sm:$0xf]
    %v699 = vpack.c.bf16 %v694, %v693
    %v700 = vld [vmem:[%s8] sm:$0x1]
    %v702 = vlaneseq
    %v703 = vshrl.u32 %v702, 7
    %v704 = vsub.s32 0, %v703
    %v705 = vrot.slane %v700, %v704
    %v711 = vunpack.c.l.b16 %v695
    %v712 = vunpack.c.l.b16 %v696
    %v713 = vunpack.c.l.b16 %v697
    %v714 = vunpack.c.l.b16 %v698
    %v715 = vpack.c.b16 %v712, %v711
    %v716 = vpack.c.b16 %v714, %v713
    %v720 = vsel %vm88, %v699, 0
    %722 = vmatprep.subr.bf16.mxu0 0
    %723 = vmatpush1.bf16.msra.mxu0 %v715
    %724 = vmatprep.subr.bf16.mxu0 0
    %725 = vmatpush1.bf16.msra.mxu0 %v716
    %726 = vmatprep.subr.bf16.mxu0 0
    %727 = vmatpush1.bf16.msra.mxu0 0
    %728 = vmatprep.subr.bf16.mxu0 0
    %729 = vmatpush1.bf16.msra.mxu0 0
    %730 = vmatprep.subr.bf16.mxu0 0
    %731 = vmatpush1.bf16.msra.mxu0 0
    %732 = vmatprep.subr.bf16.mxu0 0
    %733 = vmatpush1.bf16.msra.mxu0 0
    %734 = vmatprep.subr.bf16.mxu0 0
    %735 = vmatpush1.bf16.msra.mxu0 0
    %736 = vmatprep.subr.bf16.mxu0 0
    %737 = vmatpush1.bf16.msra.mxu0 0
    %738 = vmatprep.subr.bf16.mxu0 0
    %739 = vmatpush1.bf16.msra.mxu0 0
    %740 = vmatprep.subr.bf16.mxu0 0
    %741 = vmatpush1.bf16.msra.mxu0 0
    %742 = vmatprep.subr.bf16.mxu0 0
    %743 = vmatpush1.bf16.msra.mxu0 0
    %744 = vmatprep.subr.bf16.mxu0 0
    %745 = vmatpush1.bf16.msra.mxu0 0
    %746 = vmatprep.subr.bf16.mxu0 0
    %747 = vmatpush1.bf16.msra.mxu0 0
    %748 = vmatprep.subr.bf16.mxu0 0
    %749 = vmatpush1.bf16.msra.mxu0 0
    %750 = vmatprep.subr.bf16.mxu0 0
    %751 = vmatpush1.bf16.msra.mxu0 0
    %752 = vmatprep.subr.bf16.mxu0 0
    %753 = vmatpush1.bf16.msra.mxu0 0
    %754 = vmatprep.mubr.bf16.mxu0 0
    %755 = vmatmul.mubr.bf16.gmra.mrb[0].mxu0 %v720
    %v756 = vpop.f32.mrb[0].mxu0
    %v757 = vadd.f32 %v705, %v756
    %v758 = vpop.f32.mrb[0].mxu0
    %v759 = vpop.f32.mrb[0].mxu0
    %v760 = vadd.f32 %v705, %v759
    %v761 = vpop.f32.mrb[0].mxu0
    %762 = vdwg.mxu0
    %v763 = vadd.f32 %v130, %v757
    %v764 = vadd.f32 %v131, %v760
    %v765 = vld [vmem:[%s9] sm:$0x1]
    %v766 = vld [vmem:[%s10] sm:$0x1]
    %v767 = vsel %vm88, %v763, 0.0
    %768 = vadd.xlane.f32.xlu0 %v767
    %v769 = vpop.xlane.xlu0 %768
    %v770 = vsel %vm88, %v764, 0.0
    %771 = vadd.xlane.f32.xlu0 %v770
    %v772 = vpop.xlane.xlu0 %771
    %v773 = vmul.f32 %v769, %v95
    %v774 = vmul.f32 %v772, %v95
    %v775 = vsub.f32 %v763, %v773
    %v776 = vsub.f32 %v764, %v774
    %v777 = vmul.f32 %v775, %v775
    %v778 = vmul.f32 %v776, %v776
    %v779 = vsel %vm88, %v777, 0.0
    %780 = vadd.xlane.f32.xlu0 %v779
    %v781 = vpop.xlane.xlu0 %780
    %v782 = vsel %vm88, %v778, 0.0
    %783 = vadd.xlane.f32.xlu0 %v782
    %v784 = vpop.xlane.xlu0 %783
    %v785 = vmul.f32 %v781, %v95
    %v786 = vmul.f32 %v784, %v95
    %v787 = vadd.f32 %v785, 1e-12
    %v788 = vadd.f32 %v786, 1e-12
    %v789 = vrsqrt.pop %v787
    %v790 = vrsqrt.pop %v788
    %v791 = vmul.f32 %v775, %v789
    %v792 = vmul.f32 %v776, %v790
    %v794 = vlaneseq
    %v795 = vshrl.u32 %v794, 7
    %v796 = vsub.s32 0, %v795
    %v797 = vrot.slane %v765, %v796
    %v799 = vmul.f32 %v791, %v797
    %v800 = vmul.f32 %v792, %v797
    %v802 = vlaneseq
    %v803 = vshrl.u32 %v802, 7
    %v804 = vsub.s32 0, %v803
    %v805 = vrot.slane %v766, %v804
    %v807 = vadd.f32 %v799, %v805
    %v808 = vadd.f32 %v800, %v805
    %v809 = vld [vmem:[%s11] sm:$0xf]
    %v810 = vld [vmem:[%s11 + $0x4] sm:$0xf]
    %v811 = vld [vmem:[%s11 + $0x8] sm:$0xf]
    %v812 = vld [vmem:[%s11 + $0xc] sm:$0xf]
    %v813 = vpack.c.bf16 %v808, %v807
    %v814 = vld [vmem:[%s12] sm:$0x1]
    %v816 = vlaneseq
    %v817 = vshrl.u32 %v816, 7
    %v818 = vsub.s32 0, %v817
    %v819 = vrot.slane %v814, %v818
    %v825 = vunpack.c.l.b16 %v809
    %v826 = vunpack.c.l.b16 %v810
    %v827 = vunpack.c.l.b16 %v811
    %v828 = vunpack.c.l.b16 %v812
    %v829 = vpack.c.b16 %v826, %v825
    %v830 = vpack.c.b16 %v828, %v827
    %v834 = vsel %vm88, %v813, 0
    %836 = vmatprep.subr.bf16.mxu0 0
    %837 = vmatpush1.bf16.msra.mxu0 %v829
    %838 = vmatprep.subr.bf16.mxu0 0
    %839 = vmatpush1.bf16.msra.mxu0 %v830
    %840 = vmatprep.subr.bf16.mxu0 0
    %841 = vmatpush1.bf16.msra.mxu0 0
    %842 = vmatprep.subr.bf16.mxu0 0
    %843 = vmatpush1.bf16.msra.mxu0 0
    %844 = vmatprep.subr.bf16.mxu0 0
    %845 = vmatpush1.bf16.msra.mxu0 0
    %846 = vmatprep.subr.bf16.mxu0 0
    %847 = vmatpush1.bf16.msra.mxu0 0
    %848 = vmatprep.subr.bf16.mxu0 0
    %849 = vmatpush1.bf16.msra.mxu0 0
    %850 = vmatprep.subr.bf16.mxu0 0
    %851 = vmatpush1.bf16.msra.mxu0 0
    %852 = vmatprep.subr.bf16.mxu0 0
    %853 = vmatpush1.bf16.msra.mxu0 0
    %854 = vmatprep.subr.bf16.mxu0 0
    %855 = vmatpush1.bf16.msra.mxu0 0
    %856 = vmatprep.subr.bf16.mxu0 0
    %857 = vmatpush1.bf16.msra.mxu0 0
    %858 = vmatprep.subr.bf16.mxu0 0
    %859 = vmatpush1.bf16.msra.mxu0 0
    %860 = vmatprep.subr.bf16.mxu0 0
    %861 = vmatpush1.bf16.msra.mxu0 0
    %862 = vmatprep.subr.bf16.mxu0 0
    %863 = vmatpush1.bf16.msra.mxu0 0
    %864 = vmatprep.subr.bf16.mxu0 0
    %865 = vmatpush1.bf16.msra.mxu0 0
    %866 = vmatprep.subr.bf16.mxu0 0
    %867 = vmatpush1.bf16.msra.mxu0 0
    %868 = vmatprep.mubr.bf16.mxu0 0
    %869 = vmatmul.mubr.bf16.gmra.mrb[0].mxu0 %v834
    %v870 = vpop.f32.mrb[0].mxu0
    %v871 = vadd.f32 %v819, %v870
    %v872 = vpop.f32.mrb[0].mxu0
    %v873 = vpop.f32.mrb[0].mxu0
    %v874 = vadd.f32 %v819, %v873
    %v875 = vpop.f32.mrb[0].mxu0
    %876 = vdwg.mxu0
    %v877 = vmul.f32 %v871, %v871
    %v878 = vmul.f32 %v874, %v874
    %v879 = vmul.f32 %v871, %v877
    %v880 = vmul.f32 %v874, %v878
    %v881 = vmul.f32 %v879, 0.044715
    %v882 = vmul.f32 %v880, 0.044715
    %v883 = vadd.f32 %v871, %v881
    %v884 = vadd.f32 %v874, %v882
    %v885 = vmul.f32 %v883, 0.7978846
    %v886 = vmul.f32 %v884, 0.7978846
    %v887 = vtanh.pop %v885
    %v888 = vtanh.pop %v886
    %v889 = vadd.f32 %v887, 1.0
    %v890 = vadd.f32 %v888, 1.0
    %v891 = vmul.f32 %v889, 0.5
    %v892 = vmul.f32 %v890, 0.5
    %v893 = vmul.f32 %v871, %v891
    %v894 = vmul.f32 %v874, %v892
    %v895 = vld [vmem:[%s13] sm:$0xf]
    %v896 = vld [vmem:[%s13 + $0x4] sm:$0xf]
    %v897 = vld [vmem:[%s13 + $0x8] sm:$0xf]
    %v898 = vld [vmem:[%s13 + $0xc] sm:$0xf]
    %v899 = vld [vmem:[%s13 + $0x10] sm:$0xf]
    %v900 = vld [vmem:[%s13 + $0x14] sm:$0xf]
    %v901 = vld [vmem:[%s13 + $0x18] sm:$0xf]
    %v902 = vld [vmem:[%s13 + $0x1c] sm:$0xf]
    %v903 = vpack.c.bf16 %v894, %v893
    %v904 = vld [vmem:[%s14] sm:$0x1]
    %v906 = vlaneseq
    %v907 = vshrl.u32 %v906, 7
    %v908 = vsub.s32 0, %v907
    %v909 = vrot.slane %v904, %v908
    %v919 = vunpack.c.l.b16 %v895
    %v920 = vunpack.c.l.b16 %v896
    %v921 = vunpack.c.l.b16 %v897
    %v922 = vunpack.c.l.b16 %v898
    %v923 = vunpack.c.l.b16 %v899
    %v924 = vunpack.c.l.b16 %v900
    %v925 = vunpack.c.l.b16 %v901
    %v926 = vunpack.c.l.b16 %v902
    %v927 = vpack.c.b16 %v920, %v919
    %v928 = vpack.c.b16 %v922, %v921
    %v929 = vpack.c.b16 %v924, %v923
    %v930 = vpack.c.b16 %v926, %v925
    %vm935 = vcmask 523264
    %v937 = vsel %vm935, %v903, 0
    %939 = vmatprep.subr.bf16.mxu0 0
    %940 = vmatpush1.bf16.msra.mxu0 %v927
    %941 = vmatprep.subr.bf16.mxu0 0
    %942 = vmatpush1.bf16.msra.mxu0 %v928
    %943 = vmatprep.subr.bf16.mxu0 0
    %944 = vmatpush1.bf16.msra.mxu0 %v929
    %945 = vmatprep.subr.bf16.mxu0 0
    %946 = vmatpush1.bf16.msra.mxu0 %v930
    %947 = vmatprep.subr.bf16.mxu0 0
    %948 = vmatpush1.bf16.msra.mxu0 0
    %949 = vmatprep.subr.bf16.mxu0 0
    %950 = vmatpush1.bf16.msra.mxu0 0
    %951 = vmatprep.subr.bf16.mxu0 0
    %952 = vmatpush1.bf16.msra.mxu0 0
    %953 = vmatprep.subr.bf16.mxu0 0
    %954 = vmatpush1.bf16.msra.mxu0 0
    %955 = vmatprep.subr.bf16.mxu0 0
    %956 = vmatpush1.bf16.msra.mxu0 0
    %957 = vmatprep.subr.bf16.mxu0 0
    %958 = vmatpush1.bf16.msra.mxu0 0
    %959 = vmatprep.subr.bf16.mxu0 0
    %960 = vmatpush1.bf16.msra.mxu0 0
    %961 = vmatprep.subr.bf16.mxu0 0
    %962 = vmatpush1.bf16.msra.mxu0 0
    %963 = vmatprep.subr.bf16.mxu0 0
    %964 = vmatpush1.bf16.msra.mxu0 0
    %965 = vmatprep.subr.bf16.mxu0 0
    %966 = vmatpush1.bf16.msra.mxu0 0
    %967 = vmatprep.subr.bf16.mxu0 0
    %968 = vmatpush1.bf16.msra.mxu0 0
    %969 = vmatprep.subr.bf16.mxu0 0
    %970 = vmatpush1.bf16.msra.mxu0 0
    %971 = vmatprep.mubr.bf16.mxu0 0
    %972 = vmatmul.mubr.bf16.gmra.mrb[0].mxu0 %v937
    %v973 = vpop.f32.mrb[0].mxu0
    %v974 = vadd.f32 %v909, %v973
    %v975 = vpop.f32.mrb[0].mxu0
    %v976 = vpop.f32.mrb[0].mxu0
    %v977 = vadd.f32 %v909, %v976
    %v978 = vpop.f32.mrb[0].mxu0
    %979 = vdwg.mxu0
    %v980 = vadd.f32 %v807, %v974
    %v981 = vadd.f32 %v808, %v977
    %v982 = vld [vmem:[%s15] sm:$0x1]
    %v983 = vld [vmem:[%s16] sm:$0x1]
    %v984 = vsel %vm88, %v980, 0.0
    %985 = vadd.xlane.f32.xlu0 %v984
    %v986 = vpop.xlane.xlu0 %985
    %v987 = vsel %vm88, %v981, 0.0
    %988 = vadd.xlane.f32.xlu0 %v987
    %v989 = vpop.xlane.xlu0 %988
    %v990 = vmul.f32 %v986, %v95
    %v991 = vmul.f32 %v989, %v95
    %v992 = vsub.f32 %v980, %v990
    %v993 = vsub.f32 %v981, %v991
    %v994 = vmul.f32 %v992, %v992
    %v995 = vmul.f32 %v993, %v993
    %v996 = vsel %vm88, %v994, 0.0
    %997 = vadd.xlane.f32.xlu0 %v996
    %v998 = vpop.xlane.xlu0 %997
    %v999 = vsel %vm88, %v995, 0.0
    %1000 = vadd.xlane.f32.xlu0 %v999
    %v1001 = vpop.xlane.xlu0 %1000
    %v1002 = vmul.f32 %v998, %v95
    %v1003 = vmul.f32 %v1001, %v95
    %v1004 = vadd.f32 %v1002, 1e-12
    %v1005 = vadd.f32 %v1003, 1e-12
    %v1006 = vrsqrt.pop %v1004
    %v1007 = vrsqrt.pop %v1005
    %v1008 = vmul.f32 %v992, %v1006
    %v1009 = vmul.f32 %v993, %v1007
    %v1011 = vlaneseq
    %v1012 = vshrl.u32 %v1011, 7
    %v1013 = vsub.s32 0, %v1012
    %v1014 = vrot.slane %v982, %v1013
    %v1016 = vmul.f32 %v1008, %v1014
    %v1017 = vmul.f32 %v1009, %v1014
    %v1019 = vlaneseq
    %v1020 = vshrl.u32 %v1019, 7
    %v1021 = vsub.s32 0, %v1020
    %v1022 = vrot.slane %v983, %v1021
    %v1024 = vadd.f32 %v1016, %v1022
    %v1025 = vadd.f32 %v1017, %v1022
    %s1026 = scalar_lea.vmem %s5, 16
    %v1027 = vld [vmem:[%s1026] sm:$0xf]
    %v1028 = vld [vmem:[%s1026 + $0x4] sm:$0xf]
    %v1029 = vld [vmem:[%s1026 + $0x8] sm:$0xf]
    %v1030 = vld [vmem:[%s1026 + $0xc] sm:$0xf]
    %v1031 = vpack.c.bf16 %v1025, %v1024
    %s1032 = scalar_lea.vmem %s6, 1
    %v1033 = vld [vmem:[%s1032] sm:$0x1]
    %v1035 = vlaneseq
    %v1036 = vshrl.u32 %v1035, 7
    %v1037 = vsub.s32 0, %v1036
    %v1038 = vrot.slane %v1033, %v1037
    %v1044 = vunpack.c.l.b16 %v1027
    %v1045 = vunpack.c.l.b16 %v1028
    %v1046 = vunpack.c.l.b16 %v1029
    %v1047 = vunpack.c.l.b16 %v1030
    %v1048 = vpack.c.b16 %v1045, %v1044
    %v1049 = vpack.c.b16 %v1047, %v1046
    %v1053 = vsel %vm88, %v1031, 0
    %1055 = vmatprep.subr.bf16.mxu0 0
    %1056 = vmatpush1.bf16.msra.mxu0 %v1048
    %1057 = vmatprep.subr.bf16.mxu0 0
    %1058 = vmatpush1.bf16.msra.mxu0 %v1049
    %1059 = vmatprep.subr.bf16.mxu0 0
    %1060 = vmatpush1.bf16.msra.mxu0 0
    %1061 = vmatprep.subr.bf16.mxu0 0
    %1062 = vmatpush1.bf16.msra.mxu0 0
    %1063 = vmatprep.subr.bf16.mxu0 0
    %1064 = vmatpush1.bf16.msra.mxu0 0
    %1065 = vmatprep.subr.bf16.mxu0 0
    %1066 = vmatpush1.bf16.msra.mxu0 0
    %1067 = vmatprep.subr.bf16.mxu0 0
    %1068 = vmatpush1.bf16.msra.mxu0 0
    %1069 = vmatprep.subr.bf16.mxu0 0
    %1070 = vmatpush1.bf16.msra.mxu0 0
    %1071 = vmatprep.subr.bf16.mxu0 0
    %1072 = vmatpush1.bf16.msra.mxu0 0
    %1073 = vmatprep.subr.bf16.mxu0 0
    %1074 = vmatpush1.bf16.msra.mxu0 0
    %1075 = vmatprep.subr.bf16.mxu0 0
    %1076 = vmatpush1.bf16.msra.mxu0 0
    %1077 = vmatprep.subr.bf16.mxu0 0
    %1078 = vmatpush1.bf16.msra.mxu0 0
    %1079 = vmatprep.subr.bf16.mxu0 0
    %1080 = vmatpush1.bf16.msra.mxu0 0
    %1081 = vmatprep.subr.bf16.mxu0 0
    %1082 = vmatpush1.bf16.msra.mxu0 0
    %1083 = vmatprep.subr.bf16.mxu0 0
    %1084 = vmatpush1.bf16.msra.mxu0 0
    %1085 = vmatprep.subr.bf16.mxu0 0
    %1086 = vmatpush1.bf16.msra.mxu0 0
    %1087 = vmatprep.mubr.bf16.mxu0 0
    %1088 = vmatmul.mubr.bf16.gmra.mrb[0].mxu0 %v1053
    %v1089 = vpop.f32.mrb[0].mxu0
    %v1090 = vadd.f32 %v1038, %v1089
    %v1091 = vpop.f32.mrb[0].mxu0
    %v1092 = vpop.f32.mrb[0].mxu0
    %v1093 = vadd.f32 %v1038, %v1092
    %v1094 = vpop.f32.mrb[0].mxu0
    %1095 = vdwg.mxu0
    %v1096 = vpack.c.bf16 %v1090, %v1090
    %v1097 = vpack.c.bf16 %v1093, %v1093
    %1099 = vrot.lane.b32.xlu0 %v1096, 96
    %v1100 = vpop.permute.xlu0 %1099
    %v1102 = vsel %vm239, %v1096, 0
    %v1105 = vsel %vm239, %v1100, 0
    %1107 = vmatprep.subr.bf16.mxu0 0
    %1108 = vmatpush1.bf16.xpose.msra.mxu0 %v1105
    %1109 = vmatprep.subr.bf16.mxu0 0
    %1110 = vmatpush1.bf16.xpose.msra.mxu0 0
    %1111 = vmatprep.subr.bf16.mxu0 0
    %1112 = vmatpush1.bf16.xpose.msra.mxu0 0
    %1113 = vmatprep.subr.bf16.mxu0 0
    %1114 = vmatpush1.bf16.xpose.msra.mxu0 0
    %1115 = vmatprep.subr.bf16.mxu0 0
    %1116 = vmatpush1.bf16.xpose.msra.mxu0 0
    %1117 = vmatprep.subr.bf16.mxu0 0
    %1118 = vmatpush1.bf16.xpose.msra.mxu0 0
    %1119 = vmatprep.subr.bf16.mxu0 0
    %1120 = vmatpush1.bf16.xpose.msra.mxu0 0
    %1121 = vmatprep.subr.bf16.mxu0 0
    %1122 = vmatpush1.bf16.xpose.msra.mxu0 0
    %1123 = vmatprep.subr.bf16.mxu0 0
    %1124 = vmatpush1.bf16.xpose.msra.mxu0 0
    %1125 = vmatprep.subr.bf16.mxu0 0
    %1126 = vmatpush1.bf16.xpose.msra.mxu0 0
    %1127 = vmatprep.subr.bf16.mxu0 0
    %1128 = vmatpush1.bf16.xpose.msra.mxu0 0
    %1129 = vmatprep.subr.bf16.mxu0 0
    %1130 = vmatpush1.bf16.xpose.msra.mxu0 0
    %1131 = vmatprep.subr.bf16.mxu0 0
    %1132 = vmatpush1.bf16.xpose.msra.mxu0 0
    %1133 = vmatprep.subr.bf16.mxu0 0
    %1134 = vmatpush1.bf16.xpose.msra.mxu0 0
    %1135 = vmatprep.subr.bf16.mxu0 0
    %1136 = vmatpush1.bf16.xpose.msra.mxu0 0
    %1137 = vmatprep.subr.bf16.mxu0 0
    %1138 = vmatpush1.bf16.xpose.msra.mxu0 0
    %1139 = vmatprep.mubr.bf16.mxu0 0
    %1140 = vmatmul.mubr.bf16.gmra.mrb[0].mxu0 %v1102
    %v1141 = vpop.f32.mrb[0].mxu0
    %v1142 = vadd.f32 0.0, %v1141
    %v1143 = vpop.f32.mrb[0].mxu0
    %v1144 = vpop.f32.mrb[0].mxu0
    %v1145 = vpop.f32.mrb[0].mxu0
    %1146 = vdwg.mxu0
    %1148 = vrot.lane.b32.xlu0 %v1097, 96
    %v1149 = vpop.permute.xlu0 %1148
    %v1151 = vsel %vm239, %v1097, 0
    %v1154 = vsel %vm239, %v1149, 0
    %1156 = vmatprep.subr.bf16.mxu0 0
    %1157 = vmatpush1.bf16.xpose.msra.mxu0 %v1154
    %1158 = vmatprep.subr.bf16.mxu0 0
    %1159 = vmatpush1.bf16.xpose.msra.mxu0 0
    %1160 = vmatprep.subr.bf16.mxu0 0
    %1161 = vmatpush1.bf16.xpose.msra.mxu0 0
    %1162 = vmatprep.subr.bf16.mxu0 0
    %1163 = vmatpush1.bf16.xpose.msra.mxu0 0
    %1164 = vmatprep.subr.bf16.mxu0 0
    %1165 = vmatpush1.bf16.xpose.msra.mxu0 0
    %1166 = vmatprep.subr.bf16.mxu0 0
    %1167 = vmatpush1.bf16.xpose.msra.mxu0 0
    %1168 = vmatprep.subr.bf16.mxu0 0
    %1169 = vmatpush1.bf16.xpose.msra.mxu0 0
    %1170 = vmatprep.subr.bf16.mxu0 0
    %1171 = vmatpush1.bf16.xpose.msra.mxu0 0
    %1172 = vmatprep.subr.bf16.mxu0 0
    %1173 = vmatpush1.bf16.xpose.msra.mxu0 0
    %1174 = vmatprep.subr.bf16.mxu0 0
    %1175 = vmatpush1.bf16.xpose.msra.mxu0 0
    %1176 = vmatprep.subr.bf16.mxu0 0
    %1177 = vmatpush1.bf16.xpose.msra.mxu0 0
    %1178 = vmatprep.subr.bf16.mxu0 0
    %1179 = vmatpush1.bf16.xpose.msra.mxu0 0
    %1180 = vmatprep.subr.bf16.mxu0 0
    %1181 = vmatpush1.bf16.xpose.msra.mxu0 0
    %1182 = vmatprep.subr.bf16.mxu0 0
    %1183 = vmatpush1.bf16.xpose.msra.mxu0 0
    %1184 = vmatprep.subr.bf16.mxu0 0
    %1185 = vmatpush1.bf16.xpose.msra.mxu0 0
    %1186 = vmatprep.subr.bf16.mxu0 0
    %1187 = vmatpush1.bf16.xpose.msra.mxu0 0
    %1188 = vmatprep.mubr.bf16.mxu0 0
    %1189 = vmatmul.mubr.bf16.gmra.mrb[0].mxu0 %v1151
    %v1190 = vpop.f32.mrb[0].mxu0
    %v1191 = vadd.f32 0.0, %v1190
    %v1192 = vpop.f32.mrb[0].mxu0
    %v1193 = vpop.f32.mrb[0].mxu0
    %v1194 = vpop.f32.mrb[0].mxu0
    %1195 = vdwg.mxu0
    %v1196 = vmul.f32 %v1142, 0.25
    %v1197 = vmul.f32 %v1191, 0.25
    %v1198 = vadd.f32 %v1196, %v159
    %v1199 = vadd.f32 %v1197, %v163
    %v1200 = vsel %vm339, %v1198, -inf
    %1201 = vmax.xlane.f32.xlu0 %v1200
    %v1202 = vpop.xlane.xlu0 %1201
    %v1203 = vsel %vm339, %v1199, -inf
    %1204 = vmax.xlane.f32.xlu0 %v1203
    %v1205 = vpop.xlane.xlu0 %1204
    %v1206 = vsub.f32 %v1198, %v1202
    %v1207 = vsub.f32 %v1199, %v1205
    %v1208 = vmul.f32 %v1206, 1.442695
    %v1209 = vpow.pop %v1208
    %v1210 = vmul.f32 %v1207, 1.442695
    %v1211 = vpow.pop %v1210
    %v1212 = vsel %vm339, %v1209, 0.0
    %1213 = vadd.xlane.f32.xlu0 %v1212
    %v1214 = vpop.xlane.xlu0 %1213
    %v1215 = vsel %vm339, %v1211, 0.0
    %1216 = vadd.xlane.f32.xlu0 %v1215
    %v1217 = vpop.xlane.xlu0 %1216
    %v1218 = vrcp.pop %v1214
    %v1219 = vrcp.pop %v1217
    %v1220 = vmul.f32 %v1209, %v1218
    %v1221 = vmul.f32 %v1211, %v1219
    %v1222 = vpack.c.bf16 %v1220, %v1220
    %v1223 = vpack.c.bf16 %v1221, %v1221
    %1224 = vrot.lane.b32.xlu0 %v1096, 64
    %v1225 = vpop.permute.xlu0 %1224
    %v1227 = vsel %vm339, %v1222, 0
    %v1230 = vsel %vm369, %v1225, 0
    %1232 = vmatprep.subr.bf16.mxu0 0
    %1233 = vmatpush1.bf16.msra.mxu0 %v1230
    %1234 = vmatprep.subr.bf16.mxu0 0
    %1235 = vmatpush1.bf16.msra.mxu0 0
    %1236 = vmatprep.subr.bf16.mxu0 0
    %1237 = vmatpush1.bf16.msra.mxu0 0
    %1238 = vmatprep.subr.bf16.mxu0 0
    %1239 = vmatpush1.bf16.msra.mxu0 0
    %1240 = vmatprep.subr.bf16.mxu0 0
    %1241 = vmatpush1.bf16.msra.mxu0 0
    %1242 = vmatprep.subr.bf16.mxu0 0
    %1243 = vmatpush1.bf16.msra.mxu0 0
    %1244 = vmatprep.subr.bf16.mxu0 0
    %1245 = vmatpush1.bf16.msra.mxu0 0
    %1246 = vmatprep.subr.bf16.mxu0 0
    %1247 = vmatpush1.bf16.msra.mxu0 0
    %1248 = vmatprep.subr.bf16.mxu0 0
    %1249 = vmatpush1.bf16.msra.mxu0 0
    %1250 = vmatprep.subr.bf16.mxu0 0
    %1251 = vmatpush1.bf16.msra.mxu0 0
    %1252 = vmatprep.subr.bf16.mxu0 0
    %1253 = vmatpush1.bf16.msra.mxu0 0
    %1254 = vmatprep.subr.bf16.mxu0 0
    %1255 = vmatpush1.bf16.msra.mxu0 0
    %1256 = vmatprep.subr.bf16.mxu0 0
    %1257 = vmatpush1.bf16.msra.mxu0 0
    %1258 = vmatprep.subr.bf16.mxu0 0
    %1259 = vmatpush1.bf16.msra.mxu0 0
    %1260 = vmatprep.subr.bf16.mxu0 0
    %1261 = vmatpush1.bf16.msra.mxu0 0
    %1262 = vmatprep.subr.bf16.mxu0 0
    %1263 = vmatpush1.bf16.msra.mxu0 0
    %1264 = vmatprep.mubr.bf16.mxu0 0
    %1265 = vmatmul.mubr.bf16.gmra.mrb[0].mxu0 %v1227
    %v1266 = vpop.f32.mrb[0].mxu0
    %v1267 = vadd.f32 0.0, %v1266
    %v1268 = vpop.f32.mrb[0].mxu0
    %v1269 = vpop.f32.mrb[0].mxu0
    %v1270 = vpop.f32.mrb[0].mxu0
    %1271 = vdwg.mxu0
    %1272 = vrot.lane.b32.xlu0 %v1097, 64
    %v1273 = vpop.permute.xlu0 %1272
    %v1275 = vsel %vm339, %v1223, 0
    %v1278 = vsel %vm369, %v1273, 0
    %1280 = vmatprep.subr.bf16.mxu0 0
    %1281 = vmatpush1.bf16.msra.mxu0 %v1278
    %1282 = vmatprep.subr.bf16.mxu0 0
    %1283 = vmatpush1.bf16.msra.mxu0 0
    %1284 = vmatprep.subr.bf16.mxu0 0
    %1285 = vmatpush1.bf16.msra.mxu0 0
    %1286 = vmatprep.subr.bf16.mxu0 0
    %1287 = vmatpush1.bf16.msra.mxu0 0
    %1288 = vmatprep.subr.bf16.mxu0 0
    %1289 = vmatpush1.bf16.msra.mxu0 0
    %1290 = vmatprep.subr.bf16.mxu0 0
    %1291 = vmatpush1.bf16.msra.mxu0 0
    %1292 = vmatprep.subr.bf16.mxu0 0
    %1293 = vmatpush1.bf16.msra.mxu0 0
    %1294 = vmatprep.subr.bf16.mxu0 0
    %1295 = vmatpush1.bf16.msra.mxu0 0
    %1296 = vmatprep.subr.bf16.mxu0 0
    %1297 = vmatpush1.bf16.msra.mxu0 0
    %1298 = vmatprep.subr.bf16.mxu0 0
    %1299 = vmatpush1.bf16.msra.mxu0 0
    %1300 = vmatprep.subr.bf16.mxu0 0
    %1301 = vmatpush1.bf16.msra.mxu0 0
    %1302 = vmatprep.subr.bf16.mxu0 0
    %1303 = vmatpush1.bf16.msra.mxu0 0
    %1304 = vmatprep.subr.bf16.mxu0 0
    %1305 = vmatpush1.bf16.msra.mxu0 0
    %1306 = vmatprep.subr.bf16.mxu0 0
    %1307 = vmatpush1.bf16.msra.mxu0 0
    %1308 = vmatprep.subr.bf16.mxu0 0
    %1309 = vmatpush1.bf16.msra.mxu0 0
    %1310 = vmatprep.subr.bf16.mxu0 0
    %1311 = vmatpush1.bf16.msra.mxu0 0
    %1312 = vmatprep.mubr.bf16.mxu0 0
    %1313 = vmatmul.mubr.bf16.gmra.mrb[0].mxu0 %v1275
    %v1314 = vpop.f32.mrb[0].mxu0
    %v1315 = vadd.f32 0.0, %v1314
    %v1316 = vpop.f32.mrb[0].mxu0
    %v1317 = vpop.f32.mrb[0].mxu0
    %v1318 = vpop.f32.mrb[0].mxu0
    %1319 = vdwg.mxu0
    %1320 = vrot.lane.b32.xlu0 %v1096, 112
    %v1321 = vpop.permute.xlu0 %1320
    %1322 = vrot.lane.b32.xlu0 %v1096, 80
    %v1323 = vpop.permute.xlu0 %1322
    %v1325 = vsel %vm239, %v1321, 0
    %v1328 = vsel %vm239, %v1323, 0
    %1330 = vmatprep.subr.bf16.mxu0 0
    %1331 = vmatpush1.bf16.xpose.msra.mxu0 %v1328
    %1332 = vmatprep.subr.bf16.mxu0 0
    %1333 = vmatpush1.bf16.xpose.msra.mxu0 0
    %1334 = vmatprep.subr.bf16.mxu0 0
    %1335 = vmatpush1.bf16.xpose.msra.mxu0 0
    %1336 = vmatprep.subr.bf16.mxu0 0
    %1337 = vmatpush1.bf16.xpose.msra.mxu0 0
    %1338 = vmatprep.subr.bf16.mxu0 0
    %1339 = vmatpush1.bf16.xpose.msra.mxu0 0
    %1340 = vmatprep.subr.bf16.mxu0 0
    %1341 = vmatpush1.bf16.xpose.msra.mxu0 0
    %1342 = vmatprep.subr.bf16.mxu0 0
    %1343 = vmatpush1.bf16.xpose.msra.mxu0 0
    %1344 = vmatprep.subr.bf16.mxu0 0
    %1345 = vmatpush1.bf16.xpose.msra.mxu0 0
    %1346 = vmatprep.subr.bf16.mxu0 0
    %1347 = vmatpush1.bf16.xpose.msra.mxu0 0
    %1348 = vmatprep.subr.bf16.mxu0 0
    %1349 = vmatpush1.bf16.xpose.msra.mxu0 0
    %1350 = vmatprep.subr.bf16.mxu0 0
    %1351 = vmatpush1.bf16.xpose.msra.mxu0 0
    %1352 = vmatprep.subr.bf16.mxu0 0
    %1353 = vmatpush1.bf16.xpose.msra.mxu0 0
    %1354 = vmatprep.subr.bf16.mxu0 0
    %1355 = vmatpush1.bf16.xpose.msra.mxu0 0
    %1356 = vmatprep.subr.bf16.mxu0 0
    %1357 = vmatpush1.bf16.xpose.msra.mxu0 0
    %1358 = vmatprep.subr.bf16.mxu0 0
    %1359 = vmatpush1.bf16.xpose.msra.mxu0 0
    %1360 = vmatprep.subr.bf16.mxu0 0
    %1361 = vmatpush1.bf16.xpose.msra.mxu0 0
    %1362 = vmatprep.mubr.bf16.mxu0 0
    %1363 = vmatmul.mubr.bf16.gmra.mrb[0].mxu0 %v1325
    %v1364 = vpop.f32.mrb[0].mxu0
    %v1365 = vadd.f32 0.0, %v1364
    %v1366 = vpop.f32.mrb[0].mxu0
    %v1367 = vpop.f32.mrb[0].mxu0
    %v1368 = vpop.f32.mrb[0].mxu0
    %1369 = vdwg.mxu0
    %1370 = vrot.lane.b32.xlu0 %v1097, 112
    %v1371 = vpop.permute.xlu0 %1370
    %1372 = vrot.lane.b32.xlu0 %v1097, 80
    %v1373 = vpop.permute.xlu0 %1372
    %v1375 = vsel %vm239, %v1371, 0
    %v1378 = vsel %vm239, %v1373, 0
    %1380 = vmatprep.subr.bf16.mxu0 0
    %1381 = vmatpush1.bf16.xpose.msra.mxu0 %v1378
    %1382 = vmatprep.subr.bf16.mxu0 0
    %1383 = vmatpush1.bf16.xpose.msra.mxu0 0
    %1384 = vmatprep.subr.bf16.mxu0 0
    %1385 = vmatpush1.bf16.xpose.msra.mxu0 0
    %1386 = vmatprep.subr.bf16.mxu0 0
    %1387 = vmatpush1.bf16.xpose.msra.mxu0 0
    %1388 = vmatprep.subr.bf16.mxu0 0
    %1389 = vmatpush1.bf16.xpose.msra.mxu0 0
    %1390 = vmatprep.subr.bf16.mxu0 0
    %1391 = vmatpush1.bf16.xpose.msra.mxu0 0
    %1392 = vmatprep.subr.bf16.mxu0 0
    %1393 = vmatpush1.bf16.xpose.msra.mxu0 0
    %1394 = vmatprep.subr.bf16.mxu0 0
    %1395 = vmatpush1.bf16.xpose.msra.mxu0 0
    %1396 = vmatprep.subr.bf16.mxu0 0
    %1397 = vmatpush1.bf16.xpose.msra.mxu0 0
    %1398 = vmatprep.subr.bf16.mxu0 0
    %1399 = vmatpush1.bf16.xpose.msra.mxu0 0
    %1400 = vmatprep.subr.bf16.mxu0 0
    %1401 = vmatpush1.bf16.xpose.msra.mxu0 0
    %1402 = vmatprep.subr.bf16.mxu0 0
    %1403 = vmatpush1.bf16.xpose.msra.mxu0 0
    %1404 = vmatprep.subr.bf16.mxu0 0
    %1405 = vmatpush1.bf16.xpose.msra.mxu0 0
    %1406 = vmatprep.subr.bf16.mxu0 0
    %1407 = vmatpush1.bf16.xpose.msra.mxu0 0
    %1408 = vmatprep.subr.bf16.mxu0 0
    %1409 = vmatpush1.bf16.xpose.msra.mxu0 0
    %1410 = vmatprep.subr.bf16.mxu0 0
    %1411 = vmatpush1.bf16.xpose.msra.mxu0 0
    %1412 = vmatprep.mubr.bf16.mxu0 0
    %1413 = vmatmul.mubr.bf16.gmra.mrb[0].mxu0 %v1375
    %v1414 = vpop.f32.mrb[0].mxu0
    %v1415 = vadd.f32 0.0, %v1414
    %v1416 = vpop.f32.mrb[0].mxu0
    %v1417 = vpop.f32.mrb[0].mxu0
    %v1418 = vpop.f32.mrb[0].mxu0
    %1419 = vdwg.mxu0
    %v1420 = vmul.f32 %v1365, 0.25
    %v1421 = vmul.f32 %v1415, 0.25
    %v1422 = vadd.f32 %v1420, %v159
    %v1423 = vadd.f32 %v1421, %v163
    %v1424 = vsel %vm339, %v1422, -inf
    %1425 = vmax.xlane.f32.xlu0 %v1424
    %v1426 = vpop.xlane.xlu0 %1425
    %v1427 = vsel %vm339, %v1423, -inf
    %1428 = vmax.xlane.f32.xlu0 %v1427
    %v1429 = vpop.xlane.xlu0 %1428
    %v1430 = vsub.f32 %v1422, %v1426
    %v1431 = vsub.f32 %v1423, %v1429
    %v1432 = vmul.f32 %v1430, 1.442695
    %v1433 = vpow.pop %v1432
    %v1434 = vmul.f32 %v1431, 1.442695
    %v1435 = vpow.pop %v1434
    %v1436 = vsel %vm339, %v1433, 0.0
    %1437 = vadd.xlane.f32.xlu0 %v1436
    %v1438 = vpop.xlane.xlu0 %1437
    %v1439 = vsel %vm339, %v1435, 0.0
    %1440 = vadd.xlane.f32.xlu0 %v1439
    %v1441 = vpop.xlane.xlu0 %1440
    %v1442 = vrcp.pop %v1438
    %v1443 = vrcp.pop %v1441
    %v1444 = vmul.f32 %v1433, %v1442
    %v1445 = vmul.f32 %v1435, %v1443
    %v1446 = vpack.c.bf16 %v1444, %v1444
    %v1447 = vpack.c.bf16 %v1445, %v1445
    %1448 = vrot.lane.b32.xlu0 %v1096, 48
    %v1449 = vpop.permute.xlu0 %1448
    %v1451 = vsel %vm339, %v1446, 0
    %v1454 = vsel %vm369, %v1449, 0
    %1456 = vmatprep.subr.bf16.mxu0 0
    %1457 = vmatpush1.bf16.msra.mxu0 %v1454
    %1458 = vmatprep.subr.bf16.mxu0 0
    %1459 = vmatpush1.bf16.msra.mxu0 0
    %1460 = vmatprep.subr.bf16.mxu0 0
    %1461 = vmatpush1.bf16.msra.mxu0 0
    %1462 = vmatprep.subr.bf16.mxu0 0
    %1463 = vmatpush1.bf16.msra.mxu0 0
    %1464 = vmatprep.subr.bf16.mxu0 0
    %1465 = vmatpush1.bf16.msra.mxu0 0
    %1466 = vmatprep.subr.bf16.mxu0 0
    %1467 = vmatpush1.bf16.msra.mxu0 0
    %1468 = vmatprep.subr.bf16.mxu0 0
    %1469 = vmatpush1.bf16.msra.mxu0 0
    %1470 = vmatprep.subr.bf16.mxu0 0
    %1471 = vmatpush1.bf16.msra.mxu0 0
    %1472 = vmatprep.subr.bf16.mxu0 0
    %1473 = vmatpush1.bf16.msra.mxu0 0
    %1474 = vmatprep.subr.bf16.mxu0 0
    %1475 = vmatpush1.bf16.msra.mxu0 0
    %1476 = vmatprep.subr.bf16.mxu0 0
    %1477 = vmatpush1.bf16.msra.mxu0 0
    %1478 = vmatprep.subr.bf16.mxu0 0
    %1479 = vmatpush1.bf16.msra.mxu0 0
    %1480 = vmatprep.subr.bf16.mxu0 0
    %1481 = vmatpush1.bf16.msra.mxu0 0
    %1482 = vmatprep.subr.bf16.mxu0 0
    %1483 = vmatpush1.bf16.msra.mxu0 0
    %1484 = vmatprep.subr.bf16.mxu0 0
    %1485 = vmatpush1.bf16.msra.mxu0 0
    %1486 = vmatprep.subr.bf16.mxu0 0
    %1487 = vmatpush1.bf16.msra.mxu0 0
    %1488 = vmatprep.mubr.bf16.mxu0 0
    %1489 = vmatmul.mubr.bf16.gmra.mrb[0].mxu0 %v1451
    %v1490 = vpop.f32.mrb[0].mxu0
    %v1491 = vadd.f32 0.0, %v1490
    %v1492 = vpop.f32.mrb[0].mxu0
    %v1493 = vpop.f32.mrb[0].mxu0
    %v1494 = vpop.f32.mrb[0].mxu0
    %1495 = vdwg.mxu0
    %1496 = vrot.lane.b32.xlu0 %v1097, 48
    %v1497 = vpop.permute.xlu0 %1496
    %v1499 = vsel %vm339, %v1447, 0
    %v1502 = vsel %vm369, %v1497, 0
    %1504 = vmatprep.subr.bf16.mxu0 0
    %1505 = vmatpush1.bf16.msra.mxu0 %v1502
    %1506 = vmatprep.subr.bf16.mxu0 0
    %1507 = vmatpush1.bf16.msra.mxu0 0
    %1508 = vmatprep.subr.bf16.mxu0 0
    %1509 = vmatpush1.bf16.msra.mxu0 0
    %1510 = vmatprep.subr.bf16.mxu0 0
    %1511 = vmatpush1.bf16.msra.mxu0 0
    %1512 = vmatprep.subr.bf16.mxu0 0
    %1513 = vmatpush1.bf16.msra.mxu0 0
    %1514 = vmatprep.subr.bf16.mxu0 0
    %1515 = vmatpush1.bf16.msra.mxu0 0
    %1516 = vmatprep.subr.bf16.mxu0 0
    %1517 = vmatpush1.bf16.msra.mxu0 0
    %1518 = vmatprep.subr.bf16.mxu0 0
    %1519 = vmatpush1.bf16.msra.mxu0 0
    %1520 = vmatprep.subr.bf16.mxu0 0
    %1521 = vmatpush1.bf16.msra.mxu0 0
    %1522 = vmatprep.subr.bf16.mxu0 0
    %1523 = vmatpush1.bf16.msra.mxu0 0
    %1524 = vmatprep.subr.bf16.mxu0 0
    %1525 = vmatpush1.bf16.msra.mxu0 0
    %1526 = vmatprep.subr.bf16.mxu0 0
    %1527 = vmatpush1.bf16.msra.mxu0 0
    %1528 = vmatprep.subr.bf16.mxu0 0
    %1529 = vmatpush1.bf16.msra.mxu0 0
    %1530 = vmatprep.subr.bf16.mxu0 0
    %1531 = vmatpush1.bf16.msra.mxu0 0
    %1532 = vmatprep.subr.bf16.mxu0 0
    %1533 = vmatpush1.bf16.msra.mxu0 0
    %1534 = vmatprep.subr.bf16.mxu0 0
    %1535 = vmatpush1.bf16.msra.mxu0 0
    %1536 = vmatprep.mubr.bf16.mxu0 0
    %1537 = vmatmul.mubr.bf16.gmra.mrb[0].mxu0 %v1499
    %v1538 = vpop.f32.mrb[0].mxu0
    %v1539 = vadd.f32 0.0, %v1538
    %v1540 = vpop.f32.mrb[0].mxu0
    %v1541 = vpop.f32.mrb[0].mxu0
    %v1542 = vpop.f32.mrb[0].mxu0
    %1543 = vdwg.mxu0
    %1546 = vrot.lane.b32.xlu0 %v1491, 16
    %v1547 = vpop.permute.xlu0 %1546
    %1548 = vrot.lane.b32.xlu0 %v1539, 16
    %v1549 = vpop.permute.xlu0 %1548
    %v1552 = vsel %vm239, %v1267, %v1547
    %v1553 = vsel %vm239, %v1315, %v1549
    %s1554 = scalar_lea.vmem %s7, 16
    %v1555 = vld [vmem:[%s1554] sm:$0xf]
    %v1556 = vld [vmem:[%s1554 + $0x4] sm:$0xf]
    %v1557 = vld [vmem:[%s1554 + $0x8] sm:$0xf]
    %v1558 = vld [vmem:[%s1554 + $0xc] sm:$0xf]
    %v1559 = vpack.c.bf16 %v1553, %v1552
    %s1560 = scalar_lea.vmem %s8, 1
    %v1561 = vld [vmem:[%s1560] sm:$0x1]
    %v1563 = vlaneseq
    %v1564 = vshrl.u32 %v1563, 7
    %v1565 = vsub.s32 0, %v1564
    %v1566 = vrot.slane %v1561, %v1565
    %v1572 = vunpack.c.l.b16 %v1555
    %v1573 = vunpack.c.l.b16 %v1556
    %v1574 = vunpack.c.l.b16 %v1557
    %v1575 = vunpack.c.l.b16 %v1558
    %v1576 = vpack.c.b16 %v1573, %v1572
    %v1577 = vpack.c.b16 %v1575, %v1574
    %v1581 = vsel %vm88, %v1559, 0
    %1583 = vmatprep.subr.bf16.mxu0 0
    %1584 = vmatpush1.bf16.msra.mxu0 %v1576
    %1585 = vmatprep.subr.bf16.mxu0 0
    %1586 = vmatpush1.bf16.msra.mxu0 %v1577
    %1587 = vmatprep.subr.bf16.mxu0 0
    %1588 = vmatpush1.bf16.msra.mxu0 0
    %1589 = vmatprep.subr.bf16.mxu0 0
    %1590 = vmatpush1.bf16.msra.mxu0 0
    %1591 = vmatprep.subr.bf16.mxu0 0
    %1592 = vmatpush1.bf16.msra.mxu0 0
    %1593 = vmatprep.subr.bf16.mxu0 0
    %1594 = vmatpush1.bf16.msra.mxu0 0
    %1595 = vmatprep.subr.bf16.mxu0 0
    %1596 = vmatpush1.bf16.msra.mxu0 0
    %1597 = vmatprep.subr.bf16.mxu0 0
    %1598 = vmatpush1.bf16.msra.mxu0 0
    %1599 = vmatprep.subr.bf16.mxu0 0
    %1600 = vmatpush1.bf16.msra.mxu0 0
    %1601 = vmatprep.subr.bf16.mxu0 0
    %1602 = vmatpush1.bf16.msra.mxu0 0
    %1603 = vmatprep.subr.bf16.mxu0 0
    %1604 = vmatpush1.bf16.msra.mxu0 0
    %1605 = vmatprep.subr.bf16.mxu0 0
    %1606 = vmatpush1.bf16.msra.mxu0 0
    %1607 = vmatprep.subr.bf16.mxu0 0
    %1608 = vmatpush1.bf16.msra.mxu0 0
    %1609 = vmatprep.subr.bf16.mxu0 0
    %1610 = vmatpush1.bf16.msra.mxu0 0
    %1611 = vmatprep.subr.bf16.mxu0 0
    %1612 = vmatpush1.bf16.msra.mxu0 0
    %1613 = vmatprep.subr.bf16.mxu0 0
    %1614 = vmatpush1.bf16.msra.mxu0 0
    %1615 = vmatprep.mubr.bf16.mxu0 0
    %1616 = vmatmul.mubr.bf16.gmra.mrb[0].mxu0 %v1581
    %v1617 = vpop.f32.mrb[0].mxu0
    %v1618 = vadd.f32 %v1566, %v1617
    %v1619 = vpop.f32.mrb[0].mxu0
    %v1620 = vpop.f32.mrb[0].mxu0
    %v1621 = vadd.f32 %v1566, %v1620
    %v1622 = vpop.f32.mrb[0].mxu0
    %1623 = vdwg.mxu0
    %v1624 = vadd.f32 %v1024, %v1618
    %v1625 = vadd.f32 %v1025, %v1621
    %s1626 = scalar_lea.vmem %s9, 1
    %v1627 = vld [vmem:[%s1626] sm:$0x1]
    %s1628 = scalar_lea.vmem %s10, 1
    %v1629 = vld [vmem:[%s1628] sm:$0x1]
    %v1630 = vsel %vm88, %v1624, 0.0
    %1631 = vadd.xlane.f32.xlu0 %v1630
    %v1632 = vpop.xlane.xlu0 %1631
    %v1633 = vsel %vm88, %v1625, 0.0
    %1634 = vadd.xlane.f32.xlu0 %v1633
    %v1635 = vpop.xlane.xlu0 %1634
    %v1636 = vmul.f32 %v1632, %v95
    %v1637 = vmul.f32 %v1635, %v95
    %v1638 = vsub.f32 %v1624, %v1636
    %v1639 = vsub.f32 %v1625, %v1637
    %v1640 = vmul.f32 %v1638, %v1638
    %v1641 = vmul.f32 %v1639, %v1639
    %v1642 = vsel %vm88, %v1640, 0.0
    %1643 = vadd.xlane.f32.xlu0 %v1642
    %v1644 = vpop.xlane.xlu0 %1643
    %v1645 = vsel %vm88, %v1641, 0.0
    %1646 = vadd.xlane.f32.xlu0 %v1645
    %v1647 = vpop.xlane.xlu0 %1646
    %v1648 = vmul.f32 %v1644, %v95
    %v1649 = vmul.f32 %v1647, %v95
    %v1650 = vadd.f32 %v1648, 1e-12
    %v1651 = vadd.f32 %v1649, 1e-12
    %v1652 = vrsqrt.pop %v1650
    %v1653 = vrsqrt.pop %v1651
    %v1654 = vmul.f32 %v1638, %v1652
    %v1655 = vmul.f32 %v1639, %v1653
    %v1657 = vlaneseq
    %v1658 = vshrl.u32 %v1657, 7
    %v1659 = vsub.s32 0, %v1658
    %v1660 = vrot.slane %v1627, %v1659
    %v1662 = vmul.f32 %v1654, %v1660
    %v1663 = vmul.f32 %v1655, %v1660
    %v1665 = vlaneseq
    %v1666 = vshrl.u32 %v1665, 7
    %v1667 = vsub.s32 0, %v1666
    %v1668 = vrot.slane %v1629, %v1667
    %v1670 = vadd.f32 %v1662, %v1668
    %v1671 = vadd.f32 %v1663, %v1668
    %s1672 = scalar_lea.vmem %s11, 16
    %v1673 = vld [vmem:[%s1672] sm:$0xf]
    %v1674 = vld [vmem:[%s1672 + $0x4] sm:$0xf]
    %v1675 = vld [vmem:[%s1672 + $0x8] sm:$0xf]
    %v1676 = vld [vmem:[%s1672 + $0xc] sm:$0xf]
    %v1677 = vpack.c.bf16 %v1671, %v1670
    %s1678 = scalar_lea.vmem %s12, 1
    %v1679 = vld [vmem:[%s1678] sm:$0x1]
    %v1681 = vlaneseq
    %v1682 = vshrl.u32 %v1681, 7
    %v1683 = vsub.s32 0, %v1682
    %v1684 = vrot.slane %v1679, %v1683
    %v1690 = vunpack.c.l.b16 %v1673
    %v1691 = vunpack.c.l.b16 %v1674
    %v1692 = vunpack.c.l.b16 %v1675
    %v1693 = vunpack.c.l.b16 %v1676
    %v1694 = vpack.c.b16 %v1691, %v1690
    %v1695 = vpack.c.b16 %v1693, %v1692
    %v1699 = vsel %vm88, %v1677, 0
    %1701 = vmatprep.subr.bf16.mxu0 0
    %1702 = vmatpush1.bf16.msra.mxu0 %v1694
    %1703 = vmatprep.subr.bf16.mxu0 0
    %1704 = vmatpush1.bf16.msra.mxu0 %v1695
    %1705 = vmatprep.subr.bf16.mxu0 0
    %1706 = vmatpush1.bf16.msra.mxu0 0
    %1707 = vmatprep.subr.bf16.mxu0 0
    %1708 = vmatpush1.bf16.msra.mxu0 0
    %1709 = vmatprep.subr.bf16.mxu0 0
    %1710 = vmatpush1.bf16.msra.mxu0 0
    %1711 = vmatprep.subr.bf16.mxu0 0
    %1712 = vmatpush1.bf16.msra.mxu0 0
    %1713 = vmatprep.subr.bf16.mxu0 0
    %1714 = vmatpush1.bf16.msra.mxu0 0
    %1715 = vmatprep.subr.bf16.mxu0 0
    %1716 = vmatpush1.bf16.msra.mxu0 0
    %1717 = vmatprep.subr.bf16.mxu0 0
    %1718 = vmatpush1.bf16.msra.mxu0 0
    %1719 = vmatprep.subr.bf16.mxu0 0
    %1720 = vmatpush1.bf16.msra.mxu0 0
    %1721 = vmatprep.subr.bf16.mxu0 0
    %1722 = vmatpush1.bf16.msra.mxu0 0
    %1723 = vmatprep.subr.bf16.mxu0 0
    %1724 = vmatpush1.bf16.msra.mxu0 0
    %1725 = vmatprep.subr.bf16.mxu0 0
    %1726 = vmatpush1.bf16.msra.mxu0 0
    %1727 = vmatprep.subr.bf16.mxu0 0
    %1728 = vmatpush1.bf16.msra.mxu0 0
    %1729 = vmatprep.subr.bf16.mxu0 0
    %1730 = vmatpush1.bf16.msra.mxu0 0
    %1731 = vmatprep.subr.bf16.mxu0 0
    %1732 = vmatpush1.bf16.msra.mxu0 0
    %1733 = vmatprep.mubr.bf16.mxu0 0
    %1734 = vmatmul.mubr.bf16.gmra.mrb[0].mxu0 %v1699
    %v1735 = vpop.f32.mrb[0].mxu0
    %v1736 = vadd.f32 %v1684, %v1735
    %v1737 = vpop.f32.mrb[0].mxu0
    %v1738 = vpop.f32.mrb[0].mxu0
    %v1739 = vadd.f32 %v1684, %v1738
    %v1740 = vpop.f32.mrb[0].mxu0
    %1741 = vdwg.mxu0
    %v1742 = vmul.f32 %v1736, %v1736
    %v1743 = vmul.f32 %v1739, %v1739
    %v1744 = vmul.f32 %v1736, %v1742
    %v1745 = vmul.f32 %v1739, %v1743
    %v1746 = vmul.f32 %v1744, 0.044715
    %v1747 = vmul.f32 %v1745, 0.044715
    %v1748 = vadd.f32 %v1736, %v1746
    %v1749 = vadd.f32 %v1739, %v1747
    %v1750 = vmul.f32 %v1748, 0.7978846
    %v1751 = vmul.f32 %v1749, 0.7978846
    %v1752 = vtanh.pop %v1750
    %v1753 = vtanh.pop %v1751
    %v1754 = vadd.f32 %v1752, 1.0
    %v1755 = vadd.f32 %v1753, 1.0
    %v1756 = vmul.f32 %v1754, 0.5
    %v1757 = vmul.f32 %v1755, 0.5
    %v1758 = vmul.f32 %v1736, %v1756
    %v1759 = vmul.f32 %v1739, %v1757
    %s1760 = scalar_lea.vmem %s13, 32
    %v1761 = vld [vmem:[%s1760] sm:$0xf]
    %v1762 = vld [vmem:[%s1760 + $0x4] sm:$0xf]
    %v1763 = vld [vmem:[%s1760 + $0x8] sm:$0xf]
    %v1764 = vld [vmem:[%s1760 + $0xc] sm:$0xf]
    %v1765 = vld [vmem:[%s1760 + $0x10] sm:$0xf]
    %v1766 = vld [vmem:[%s1760 + $0x14] sm:$0xf]
    %v1767 = vld [vmem:[%s1760 + $0x18] sm:$0xf]
    %v1768 = vld [vmem:[%s1760 + $0x1c] sm:$0xf]
    %v1769 = vpack.c.bf16 %v1759, %v1758
    %s1770 = scalar_lea.vmem %s14, 1
    %v1771 = vld [vmem:[%s1770] sm:$0x1]
    %v1773 = vlaneseq
    %v1774 = vshrl.u32 %v1773, 7
    %v1775 = vsub.s32 0, %v1774
    %v1776 = vrot.slane %v1771, %v1775
    %v1786 = vunpack.c.l.b16 %v1761
    %v1787 = vunpack.c.l.b16 %v1762
    %v1788 = vunpack.c.l.b16 %v1763
    %v1789 = vunpack.c.l.b16 %v1764
    %v1790 = vunpack.c.l.b16 %v1765
    %v1791 = vunpack.c.l.b16 %v1766
    %v1792 = vunpack.c.l.b16 %v1767
    %v1793 = vunpack.c.l.b16 %v1768
    %v1794 = vpack.c.b16 %v1787, %v1786
    %v1795 = vpack.c.b16 %v1789, %v1788
    %v1796 = vpack.c.b16 %v1791, %v1790
    %v1797 = vpack.c.b16 %v1793, %v1792
    %v1803 = vsel %vm935, %v1769, 0
    %1805 = vmatprep.subr.bf16.mxu0 0
    %1806 = vmatpush1.bf16.msra.mxu0 %v1794
    %1807 = vmatprep.subr.bf16.mxu0 0
    %1808 = vmatpush1.bf16.msra.mxu0 %v1795
    %1809 = vmatprep.subr.bf16.mxu0 0
    %1810 = vmatpush1.bf16.msra.mxu0 %v1796
    %1811 = vmatprep.subr.bf16.mxu0 0
    %1812 = vmatpush1.bf16.msra.mxu0 %v1797
    %1813 = vmatprep.subr.bf16.mxu0 0
    %1814 = vmatpush1.bf16.msra.mxu0 0
    %1815 = vmatprep.subr.bf16.mxu0 0
    %1816 = vmatpush1.bf16.msra.mxu0 0
    %1817 = vmatprep.subr.bf16.mxu0 0
    %1818 = vmatpush1.bf16.msra.mxu0 0
    %1819 = vmatprep.subr.bf16.mxu0 0
    %1820 = vmatpush1.bf16.msra.mxu0 0
    %1821 = vmatprep.subr.bf16.mxu0 0
    %1822 = vmatpush1.bf16.msra.mxu0 0
    %1823 = vmatprep.subr.bf16.mxu0 0
    %1824 = vmatpush1.bf16.msra.mxu0 0
    %1825 = vmatprep.subr.bf16.mxu0 0
    %1826 = vmatpush1.bf16.msra.mxu0 0
    %1827 = vmatprep.subr.bf16.mxu0 0
    %1828 = vmatpush1.bf16.msra.mxu0 0
    %1829 = vmatprep.subr.bf16.mxu0 0
    %1830 = vmatpush1.bf16.msra.mxu0 0
    %1831 = vmatprep.subr.bf16.mxu0 0
    %1832 = vmatpush1.bf16.msra.mxu0 0
    %1833 = vmatprep.subr.bf16.mxu0 0
    %1834 = vmatpush1.bf16.msra.mxu0 0
    %1835 = vmatprep.subr.bf16.mxu0 0
    %1836 = vmatpush1.bf16.msra.mxu0 0
    %1837 = vmatprep.mubr.bf16.mxu0 0
    %1838 = vmatmul.mubr.bf16.gmra.mrb[0].mxu0 %v1803
    %v1839 = vpop.f32.mrb[0].mxu0
    %v1840 = vadd.f32 %v1776, %v1839
    %v1841 = vpop.f32.mrb[0].mxu0
    %v1842 = vpop.f32.mrb[0].mxu0
    %v1843 = vadd.f32 %v1776, %v1842
    %v1844 = vpop.f32.mrb[0].mxu0
    %1845 = vdwg.mxu0
    %v1846 = vadd.f32 %v1670, %v1840
    %v1847 = vadd.f32 %v1671, %v1843
    %s1848 = scalar_lea.vmem %s15, 1
    %v1849 = vld [vmem:[%s1848] sm:$0x1]
    %s1850 = scalar_lea.vmem %s16, 1
    %v1851 = vld [vmem:[%s1850] sm:$0x1]
    %v1852 = vsel %vm88, %v1846, 0.0
    %1853 = vadd.xlane.f32.xlu0 %v1852
    %v1854 = vpop.xlane.xlu0 %1853
    %v1855 = vsel %vm88, %v1847, 0.0
    %1856 = vadd.xlane.f32.xlu0 %v1855
    %v1857 = vpop.xlane.xlu0 %1856
    %v1858 = vmul.f32 %v1854, %v95
    %v1859 = vmul.f32 %v1857, %v95
    %v1860 = vsub.f32 %v1846, %v1858
    %v1861 = vsub.f32 %v1847, %v1859
    %v1862 = vmul.f32 %v1860, %v1860
    %v1863 = vmul.f32 %v1861, %v1861
    %v1864 = vsel %vm88, %v1862, 0.0
    %1865 = vadd.xlane.f32.xlu0 %v1864
    %v1866 = vpop.xlane.xlu0 %1865
    %v1867 = vsel %vm88, %v1863, 0.0
    %1868 = vadd.xlane.f32.xlu0 %v1867
    %v1869 = vpop.xlane.xlu0 %1868
    %v1870 = vmul.f32 %v1866, %v95
    %v1871 = vmul.f32 %v1869, %v95
    %v1872 = vadd.f32 %v1870, 1e-12
    %v1873 = vadd.f32 %v1871, 1e-12
    %v1874 = vrsqrt.pop %v1872
    %v1875 = vrsqrt.pop %v1873
    %v1876 = vmul.f32 %v1860, %v1874
    %v1877 = vmul.f32 %v1861, %v1875
    %v1879 = vlaneseq
    %v1880 = vshrl.u32 %v1879, 7
    %v1881 = vsub.s32 0, %v1880
    %v1882 = vrot.slane %v1849, %v1881
    %v1884 = vmul.f32 %v1876, %v1882
    %v1885 = vmul.f32 %v1877, %v1882
    %v1887 = vlaneseq
    %v1888 = vshrl.u32 %v1887, 7
    %v1889 = vsub.s32 0, %v1888
    %v1890 = vrot.slane %v1851, %v1889
    %v1892 = vadd.f32 %v1884, %v1890
    %v1893 = vadd.f32 %v1885, %v1890
    %v1894 = vld [vmem:[%s2] sm:$0x3]
    %v1896 = vsel %vm239, %v1894, 0
    %1898 = vmatprep.subr.mxu0 0.0
    %1899 = vmatpush1.msra.mxu0 %v1892
    %1900 = vmatprep.subr.mxu0 0.0
    %1901 = vmatpush1.msra.mxu0 %v1893
    %1902 = vmatprep.subr.mxu0 0.0
    %1903 = vmatpush1.msra.mxu0 0.0
    %1904 = vmatprep.subr.mxu0 0.0
    %1905 = vmatpush1.msra.mxu0 0.0
    %1906 = vmatprep.subr.mxu0 0.0
    %1907 = vmatpush1.msra.mxu0 0.0
    %1908 = vmatprep.subr.mxu0 0.0
    %1909 = vmatpush1.msra.mxu0 0.0
    %1910 = vmatprep.subr.mxu0 0.0
    %1911 = vmatpush1.msra.mxu0 0.0
    %1912 = vmatprep.subr.mxu0 0.0
    %1913 = vmatpush1.msra.mxu0 0.0
    %1914 = vmatprep.subr.mxu0 0.0
    %1915 = vmatpush1.msra.mxu0 0.0
    %1916 = vmatprep.subr.mxu0 0.0
    %1917 = vmatpush1.msra.mxu0 0.0
    %1918 = vmatprep.subr.mxu0 0.0
    %1919 = vmatpush1.msra.mxu0 0.0
    %1920 = vmatprep.subr.mxu0 0.0
    %1921 = vmatpush1.msra.mxu0 0.0
    %1922 = vmatprep.subr.mxu0 0.0
    %1923 = vmatpush1.msra.mxu0 0.0
    %1924 = vmatprep.subr.mxu0 0.0
    %1925 = vmatpush1.msra.mxu0 0.0
    %1926 = vmatprep.subr.mxu0 0.0
    %1927 = vmatpush1.msra.mxu0 0.0
    %1928 = vmatprep.subr.mxu0 0.0
    %1929 = vmatpush1.msra.mxu0 0.0
    %1930 = vmatprep.subr.mxu0 0.0
    %1931 = vmatpush1.msra.mxu0 0.0
    %1932 = vmatprep.subr.mxu0 0.0
    %1933 = vmatpush1.msra.mxu0 0.0
    %1934 = vmatprep.subr.mxu0 0.0
    %1935 = vmatpush1.msra.mxu0 0.0
    %1936 = vmatprep.subr.mxu0 0.0
    %1937 = vmatpush1.msra.mxu0 0.0
    %1938 = vmatprep.subr.mxu0 0.0
    %1939 = vmatpush1.msra.mxu0 0.0
    %1940 = vmatprep.subr.mxu0 0.0
    %1941 = vmatpush1.msra.mxu0 0.0
    %1942 = vmatprep.subr.mxu0 0.0
    %1943 = vmatpush1.msra.mxu0 0.0
    %1944 = vmatprep.subr.mxu0 0.0
    %1945 = vmatpush1.msra.mxu0 0.0
    %1946 = vmatprep.subr.mxu0 0.0
    %1947 = vmatpush1.msra.mxu0 0.0
    %1948 = vmatprep.subr.mxu0 0.0
    %1949 = vmatpush1.msra.mxu0 0.0
    %1950 = vmatprep.subr.mxu0 0.0
    %1951 = vmatpush1.msra.mxu0 0.0
    %1952 = vmatprep.subr.mxu0 0.0
    %1953 = vmatpush1.msra.mxu0 0.0
    %1954 = vmatprep.subr.mxu0 0.0
    %1955 = vmatpush1.msra.mxu0 0.0
    %1956 = vmatprep.subr.mxu0 0.0
    %1957 = vmatpush1.msra.mxu0 0.0
    %1958 = vmatprep.subr.mxu0 0.0
    %1959 = vmatpush1.msra.mxu0 0.0
    %1960 = vmatprep.subr.mxu0 0.0
    %1961 = vmatpush1.msra.mxu0 0.0
    %1962 = vmatprep.mubr.f32.mxu0 0.0
    %1963 = vmatmul.mubr.f32.gmra.mrb[0].mxu0 %v1896
    %v1964 = vpop.f32.mrb[0].mxu0
    %v1965 = vadd.f32 0.0, %v1964
    %v1966 = vpop.f32.mrb[0].mxu0
    %1967 = vdwg.mxu0
    %vm1968 = vcmask 123904
    %v1969 = vsel %vm1968, %v1894, 0.0
    %1970 = vadd.xlane.f32.xlu0 %v1969
    %v1971 = vpop.xlane.xlu0 %1970
    %v1972 = vmax.f32 %v1971, 1e-09
    %v1973 = vrcp.pop %v1972
    %v1974 = vmul.f32 %v1965, %v1973
    %v1975 = vmul.f32 %v1974, %v1974
    %vm1976 = vcmask 254976
    %v1977 = vsel %vm1976, %v1975, 0.0
    %1978 = vadd.xlane.f32.xlu0 %v1977
    %v1979 = vpop.xlane.xlu0 %1978
    %v1980 = vmax.f32 %v1979, 1e-24
    %v1981 = vrsqrt.pop %v1980
    %v1982 = vmul.f32 %v1974, %v1981
    %1983 = vst.msk [vmem:[#allocation7] sm:$0x3] %vm1976, %v1982
    // Predicated region
    $region78: #{tpu_custom_call.1} parent=1 // pred_check
      _
    $region79: #{tpu_custom_call.1} parent=1 // pred_check_branch
      %1985 = sbr.rel (0) target = $region81
    $region80: #{tpu_custom_call.1} parent=1 // pred_region
      %s1987 = ssub.s32 32, 32
      %1988 = vsyncadd [#allocation4], %s1987
      %s1990 = sshll.u32 [#allocation7], 4
      %s1991 = int_to_ptr.vmem [resolvable:$true] %s1990
      %1993 = dma.vmem_to_hbm [thread:$0]  %s1991, 32, %s17, [#allocation4]
    $region81: #{tpu_custom_call.1} parent=1 // pred_fallthru
      _
    // Predicated region
    $region82: #{tpu_custom_call.1} parent=1 // pred_check
      _
    $region83: #{tpu_custom_call.1} parent=1 // pred_check_branch
      %1995 = sbr.rel (0) target = $region85
    $region84: #{tpu_custom_call.1} parent=1 // pred_region
      %1996 = dma.done [#allocation4], 32
    $region85: #{tpu_custom_call.1} parent=1 // pred_fallthru
      _
    %1997 = vsyncpa [#allocation3], 1
    %1998 = vsyncpa [#allocation6], 1
    %1999 = vsyncpa [#allocation4], 1

</llo_original>
